<compile_context>
chip_gen: v6e
topology: v6e:2x2x1
jax: 0.10.0
libtpu: 0.0.40
codegen_flags: <defaults>
</compile_context>

<pallas_src>
import math
import functools

import jax
import jax.numpy as jnp
from jax import lax
from jax.experimental import pallas as pl
from jax.experimental.pallas import tpu as pltpu


# ----------------------- generation-aware configuration ---------------------

def _device_kind():
    try:
        return jax.devices()[0].device_kind.lower()
    except Exception:
        return ""


_KIND = _device_kind()
# bf16 VPU/EUP available on v6e / v7x; keep f32 elementwise elsewhere (v5e/v4).
_BF16_EPILOGUE = ("v6" in _KIND) or ("v7" in _KIND)


def _vmem_capacity_bytes():
    try:
        return int(pltpu.get_tpu_info().vmem_capacity_bytes)
    except Exception:
        pass
    # Heuristic fallback: v5*/v6* parts have 128 MiB VMEM, assume 64 MiB else.
    if ("v5" in _KIND) or ("v6" in _KIND):
        return 128 * 1024 * 1024
    return 64 * 1024 * 1024


_VMEM_CAP = _vmem_capacity_bytes()
_BIG_VMEM = _VMEM_CAP >= 96 * 1024 * 1024
# ~100 MiB scoped limit on 128-MiB parts (v5e/v6e), 48 MiB on v7x (64 MiB phys).
_VMEM_LIMIT = (100 * 1024 * 1024) if _BIG_VMEM else (48 * 1024 * 1024)

# Tile candidates (largest-first); 256-multiples keep the v6e/v7x 256x256 MXU
# full, 128 fallbacks serve v5e's 4x128^2 MXU and odd dims.
_TM_CAND = (512, 256, 128) if _BIG_VMEM else (256, 128)
_TN_CAND = (1024, 512, 256, 128) if _BIG_VMEM else (512, 256, 128)
_TK_CAND = (512, 256, 128)
_TQ_CAND = (256, 128)


def _pick_tile(dim, candidates):
    """Largest candidate tile that evenly divides `dim`, else the full dim."""
    for c in candidates:
        if dim >= c and dim % c == 0:
            return c
    return dim


# ----------------------------- Pallas kernels ------------------------------

def _ln_matmul_kernel(x_ref, g_ref, b_ref, w_ref, bias_ref, o_ref, xn_ref,
                      *, activation):
    """Fused LayerNorm (f32, cached) -> bf16 MXU matmul -> bias (+ GELU).

    LN is computed once per row-block (at j == 0) and cached as bf16 in a VMEM
    scratch, so the mean/var/rsqrt work is NOT repeated for every N tile.
    """
    @pl.when(pl.program_id(1) == 0)
    def _():
        x = x_ref[...].astype(jnp.float32)                    # (tm, K)
        mu = jnp.mean(x, axis=-1, keepdims=True)
        var = jnp.mean((x - mu) ** 2, axis=-1, keepdims=True)
        xn = (x - mu) * lax.rsqrt(var + 1e-5)
        xn_ref[...] = (xn * g_ref[...] + b_ref[...]).astype(jnp.bfloat16)

    y = jnp.dot(xn_ref[...], w_ref[...],
                preferred_element_type=jnp.float32)            # (tm, tn) f32 acc
    y = y + bias_ref[...]                                      # bias kept f32
    if activation == "gelu":
        if _BF16_EPILOGUE:
            y = jax.nn.gelu(y.astype(jnp.bfloat16))            # bf16 VPU/EUP (v6e/v7x)
        else:
            y = jax.nn.gelu(y)                                 # f32 path (v5e)
    o_ref[...] = y.astype(o_ref.dtype)


def _matmul_residual_kernel(x_ref, w_ref, bias_ref, r_ref, o_ref, acc_ref):
    """K-tiled bf16 matmul with f32 accumulator; bias + residual fused at end."""
    @pl.when(pl.program_id(2) == 0)
    def _():
        acc_ref[...] = jnp.zeros_like(acc_ref)

    acc_ref[...] += jnp.dot(x_ref[...].astype(jnp.bfloat16), w_ref[...],
                            preferred_element_type=jnp.float32)

    @pl.when(pl.program_id(2) == pl.num_programs(2) - 1)
    def _():
        y = acc_ref[...] + bias_ref[...] + r_ref[...].astype(jnp.float32)
        o_ref[...] = y.astype(o_ref.dtype)


def _attention_kernel(q_ref, k_ref, v_ref, pad_ref, o_ref, acc_ref,
                      *, num_heads, scale, q_tile):
    """Query-tiled causal attention.

    Per grid step (b, qi): Q tile (tq, D), full K/V (S, D) resident across qi.
    Heads are read via ref slices (no whole-slab value load); causal mask is
    built in-kernel (iota) and folded with the padding mask into one additive
    f32 bias; scores/softmax in f32 with pl.reciprocal; p@v in bf16; per-head
    results land in a (tq, D) f32 VMEM scratch, stored lane-dense once.
    """
    tq = q_ref.shape[1]
    S = k_ref.shape[1]
    D = q_ref.shape[2]
    dh = D // num_heads
    q0 = pl.program_id(1) * q_tile

    # Additive mask bias, computed ONCE per grid step (shared by all heads).
    q_pos = q0 + lax.broadcasted_iota(jnp.int32, (tq, S), 0)
    k_pos = lax.broadcasted_iota(jnp.int32, (tq, S), 1)
    ok = jnp.logical_and(k_pos <= q_pos, pad_ref[0] > 0)       # (tq, S)
    bias = jnp.where(ok, jnp.float32(0.0), jnp.float32(-1e9))  # f32 (tq, S)

    # TODO(synk): dh=64 means odd heads start at a non-128 lane offset; a
    # head-major weight layout (or H as a grid axis) would make every slice
    # lane-aligned.  Kept head-loop + ref slices for shape-generality.
    for h in range(num_heads):
        lo, hi = h * dh, (h + 1) * dh
        # Scale folded into the small (tq, dh) bf16 Q tile, not the (tq, S) scores.
        qh = q_ref[0, :, lo:hi] * scale                        # bf16 (tq, dh)
        kh = k_ref[0, :, lo:hi]                                # bf16 (S, dh)
        vh = v_ref[0, :, lo:hi]                                # bf16 (S, dh)

        # q @ k^T via dot_general contracting dh on both operands (no .T).
        s = lax.dot_general(qh, kh, (((1,), (1,)), ((), ())),
                            preferred_element_type=jnp.float32)  # (tq, S)
        s = s + bias
        s = s - jnp.max(s, axis=-1, keepdims=True)
        p = jnp.exp(s)
        denom = jnp.sum(p, axis=-1, keepdims=True)
        p = p * pl.reciprocal(denom, approx=True)              # EUP, ~free
        acc_ref[:, lo:hi] = jnp.dot(p.astype(jnp.bfloat16), vh,
                                    preferred_element_type=jnp.float32)

    # TODO(synk): for very long sequences convert the inner part to a
    # flash-style online-softmax loop over KV tiles (bounds K/V VMEM too).
    o_ref[0] = acc_ref[...].astype(o_ref.dtype)                # lane-dense store


# ------------------------------ Pallas wrappers -----------------------------

def pallas_ln_matmul(x, gamma, beta, w, bias, activation=None,
                     out_dtype=jnp.bfloat16):
    """Fused LN + (x @ w + bias) [+ GELU].  x: (M, K), w: (K, N) bf16."""
    M, K = x.shape
    N = w.shape[1]
    tm = _pick_tile(M, _TM_CAND)
    tn = _pick_tile(N, _TN_CAND)
    grid = (M // tm, N // tn)
    return pl.pallas_call(
        functools.partial(_ln_matmul_kernel, activation=activation),
        out_shape=jax.ShapeDtypeStruct((M, N), out_dtype),
        grid=grid,
        in_specs=[
            pl.BlockSpec((tm, K), lambda i, j: (i, 0)),
            pl.BlockSpec((1, K), lambda i, j: (0, 0)),
            pl.BlockSpec((1, K), lambda i, j: (0, 0)),
            pl.BlockSpec((K, tn), lambda i, j: (0, j)),
            pl.BlockSpec((1, tn), lambda i, j: (0, j)),
        ],
        out_specs=pl.BlockSpec((tm, tn), lambda i, j: (i, j)),
        scratch_shapes=[pltpu.VMEM((tm, K), jnp.bfloat16)],     # cached LN output
        compiler_params=pltpu.CompilerParams(
            # j must iterate sequentially per row-block so the LN cache written
            # at j==0 is valid for j>0; i stays parallel for megacore.
            dimension_semantics=("parallel", "arbitrary"),
            vmem_limit_bytes=_VMEM_LIMIT),
    )(x, gamma.reshape(1, K).astype(jnp.float32),
      beta.reshape(1, K).astype(jnp.float32),
      w, bias.reshape(1, N).astype(jnp.float32))


def pallas_matmul_residual(x, w, bias, residual, out_dtype=jnp.bfloat16):
    """residual + (x @ w + bias), K-tiled with f32 accumulator scratch."""
    M, K = x.shape
    N = w.shape[1]
    tm = _pick_tile(M, _TM_CAND)
    tn = _pick_tile(N, _TN_CAND)
    tk = _pick_tile(K, _TK_CAND)
    grid = (M // tm, N // tn, K // tk)
    return pl.pallas_call(
        _matmul_residual_kernel,
        out_shape=jax.ShapeDtypeStruct((M, N), out_dtype),
        grid=grid,
        in_specs=[
            pl.BlockSpec((tm, tk), lambda i, j, k: (i, k)),
            pl.BlockSpec((tk, tn), lambda i, j, k: (k, j)),
            pl.BlockSpec((1, tn), lambda i, j, k: (0, j)),
            pl.BlockSpec((tm, tn), lambda i, j, k: (i, j)),
        ],
        out_specs=pl.BlockSpec((tm, tn), lambda i, j, k: (i, j)),
        scratch_shapes=[pltpu.VMEM((tm, tn), jnp.float32)],
        compiler_params=pltpu.CompilerParams(
            dimension_semantics=("parallel", "parallel", "arbitrary"),
            vmem_limit_bytes=_VMEM_LIMIT),
    )(x, w, bias.reshape(1, N).astype(jnp.float32), residual)


def pallas_attention(q, k, v, attention_mask, num_heads, out_dtype=jnp.bfloat16):
    """q/k/v: (B, S, D) bf16; attention_mask: (B, S), 1 = real token."""
    B, S, D = q.shape
    dh = D // num_heads
    scale = 1.0 / math.sqrt(dh)
    tq = _pick_tile(S, _TQ_CAND)
    pad = attention_mask.astype(jnp.int32).reshape(B, 1, S)

    return pl.pallas_call(
        functools.partial(_attention_kernel, num_heads=num_heads, scale=scale,
                          q_tile=tq),
        out_shape=jax.ShapeDtypeStruct((B, S, D), out_dtype),
        grid=(B, S // tq),                          # 2 parallel axes -> megacore
        in_specs=[
            pl.BlockSpec((1, tq, D), lambda b, qi: (b, qi, 0)),   # Q tile
            pl.BlockSpec((1, S, D), lambda b, qi: (b, 0, 0)),     # K (resident over qi)
            pl.BlockSpec((1, S, D), lambda b, qi: (b, 0, 0)),     # V (resident over qi)
            pl.BlockSpec((1, 1, S), lambda b, qi: (b, 0, 0)),     # padding mask
        ],
        out_specs=pl.BlockSpec((1, tq, D), lambda b, qi: (b, qi, 0)),
        scratch_shapes=[pltpu.VMEM((tq, D), jnp.float32)],        # per-head acc
        compiler_params=pltpu.CompilerParams(
            dimension_semantics=("parallel", "parallel"),
            vmem_limit_bytes=_VMEM_LIMIT),
    )(q, k, v, pad)


# ------------------------------ Model definition ----------------------------

def init_params(key, *, vocab, max_pos, d, num_layers):
    keys = jax.random.split(key, 3 + num_layers)

    def nrm(k, shape, dtype=jnp.float32):
        return (0.02 * jax.random.normal(k, shape)).astype(dtype)

    params = {
        "wte": nrm(keys[0], (vocab, d)),
        "wpe": nrm(keys[1], (max_pos, d)),
        "ln_f_g": jnp.ones((d,), jnp.float32),
        "ln_f_b": jnp.zeros((d,), jnp.float32),
        "head_w": nrm(keys[2], (d, 2)),           # paraphrase_detection_head
        "head_b": jnp.zeros((2,), jnp.float32),
        "layers": [],
    }
    for i in range(num_layers):
        lk = jax.random.split(keys[3 + i], 4)
        params["layers"].append({
            "ln1_g": jnp.ones((d,), jnp.float32), "ln1_b": jnp.zeros((d,), jnp.float32),
            # fused QKV weight: [Wq | Wk | Wv] along N, bf16 for the MXU
            "w_qkv": nrm(lk[0], (d, 3 * d), jnp.bfloat16),
            "b_qkv": jnp.zeros((3 * d,), jnp.float32),
            "wo": nrm(lk[1], (d, d), jnp.bfloat16), "bo": jnp.zeros((d,), jnp.float32),
            "ln2_g": jnp.ones((d,), jnp.float32), "ln2_b": jnp.zeros((d,), jnp.float32),
            "w_fc": nrm(lk[2], (d, 4 * d), jnp.bfloat16),
            "b_fc": jnp.zeros((4 * d,), jnp.float32),
            "w_proj": nrm(lk[3], (4 * d, d), jnp.bfloat16),
            "b_proj": jnp.zeros((d,), jnp.float32),
        })
    return params


def paraphrase_gpt_forward(params, input_ids, attention_mask, *, num_heads):
    B, S = input_ids.shape
    D = params["wte"].shape[1]

    # Embedding gathers are glue (data-dependent row gather stays in plain JAX).
    # Residual stream carried in bf16 (all LN/softmax/acc math is f32 in-kernel).
    x = (params["wte"][input_ids]
         + params["wpe"][jnp.arange(S)][None, :, :]).astype(jnp.bfloat16)
    # NOTE: embedding dropout is identity in eval mode.

    for layer in params["layers"]:
        x2d = x.reshape(B * S, D)

        # --- causal self-attention block (pre-LN), LN1 + QKV fused ---
        qkv = pallas_ln_matmul(x2d, layer["ln1_g"], layer["ln1_b"],
                               layer["w_qkv"], layer["b_qkv"],
                               out_dtype=jnp.bfloat16).reshape(B, S, 3 * D)
        q, k, v = jnp.split(qkv, 3, axis=-1)                    # lane-dense (B,S,D)
        attn = pallas_attention(q, k, v, attention_mask, num_heads)   # bf16
        # output projection with the residual add fused into the kernel
        x = pallas_matmul_residual(attn.reshape(B * S, D), layer["wo"],
                                   layer["bo"], x2d,
                                   out_dtype=jnp.bfloat16).reshape(B, S, D)

        # --- MLP block (pre-LN), LN2 + FC + GELU fused ---
        x2d = x.reshape(B * S, D)
        m = pallas_ln_matmul(x2d, layer["ln2_g"], layer["ln2_b"],
                             layer["w_fc"], layer["b_fc"],
                             activation="gelu", out_dtype=jnp.bfloat16)
        x = pallas_matmul_residual(m, layer["w_proj"], layer["b_proj"], x2d,
                                   out_dtype=jnp.bfloat16).reshape(B, S, D)

    # outputs['last_token']: hidden state at the last non-padded position.
    # Final LN is per-token, so selecting first then normalizing is equivalent;
    # the LN-of-one-row + Linear(d, 2) head is a tiny GEMV -> plain JAX
    # (a pallas_call here would be pure launch/masked-store overhead).
    last_idx = jnp.sum(attention_mask.astype(jnp.int32), axis=-1) - 1   # (B,)
    last_h = x[jnp.arange(B), last_idx].astype(jnp.float32)             # (B, D)
    mu = jnp.mean(last_h, axis=-1, keepdims=True)
    var = jnp.mean((last_h - mu) ** 2, axis=-1, keepdims=True)
    lh = (last_h - mu) * lax.rsqrt(var + 1e-5) * params["ln_f_g"] + params["ln_f_b"]
    logits = lh @ params["head_w"] + params["head_b"]                   # (B, 2)
    return logits


# ----------------------------------- main -----------------------------------

if __name__ == "__main__":
    # Small shapes consistent with the module's forward: (batch, seq) int ids.
    B, S, D, H, L, VOCAB = 2, 8, 32, 2, 2, 128

    key = jax.random.PRNGKey(0)
    k_param, k_ids = jax.random.split(key)

    params = init_params(k_param, vocab=VOCAB, max_pos=S, d=D, num_layers=L)

    input_ids = jax.random.randint(k_ids, (B, S), 0, VOCAB, dtype=jnp.int32)
    # second example has 2 padding tokens at the end
    attention_mask = jnp.array(
        [[1, 1, 1, 1, 1, 1, 1, 1],
         [1, 1, 1, 1, 1, 1, 0, 0]], dtype=jnp.int32)

    fwd = jax.jit(functools.partial(paraphrase_gpt_forward, num_heads=H))
    logits = fwd(params, input_ids, attention_mask)
    jax.block_until_ready(logits)

    assert logits.shape == (B, 2) and logits.dtype == jnp.float32
    assert bool(jnp.all(jnp.isfinite(logits)))
    # TODO(synk): pretrained GPT-2 checkpoint loading intentionally replaced by
    # deterministic random init (synthetic kernel).
    print("KERNEL_OK")
</pallas_src>

<mosaic_0001>
module attributes {stable_mosaic.version = 11 : i64} {
  func.func @_ln_matmul_kernel(%arg0: i32, %arg1: i32, %arg2: memref<16x32xbf16, #tpu.memory_space<vmem>>, %arg3: memref<1x32xf32, #tpu.memory_space<vmem>>, %arg4: memref<1x32xf32, #tpu.memory_space<vmem>>, %arg5: memref<32x96xbf16, #tpu.memory_space<vmem>>, %arg6: memref<1x96xf32, #tpu.memory_space<vmem>>, %arg7: memref<16x96xbf16, #tpu.memory_space<vmem>>, %arg8: memref<16x32xbf16, #tpu.memory_space<vmem>>) attributes {dimension_semantics = [#tpu.dimension_semantics<parallel>, #tpu.dimension_semantics<arbitrary>], iteration_bounds = array<i64: 1, 1>, scalar_prefetch = 0 : i64, scratch_operands = 1 : i64, tpu.core_type = #tpu.core_type<tc>, window_params = [{transform_indices = @transform_0, window_bounds = array<i64: 16, 32>}, {pipeline_mode = #tpu.pipeline_mode<synchronous>, transform_indices = @transform_1, window_bounds = array<i64: 1, 32>}, {pipeline_mode = #tpu.pipeline_mode<synchronous>, transform_indices = @transform_2, window_bounds = array<i64: 1, 32>}, {transform_indices = @transform_3, window_bounds = array<i64: 32, 96>}, {transform_indices = @transform_4, window_bounds = array<i64: 1, 96>}, {transform_indices = @transform_5, window_bounds = array<i64: 16, 96>}]} {
    %c0_i32 = arith.constant 0 : i32
    %0 = arith.cmpi eq, %arg1, %c0_i32 : i32
    %1 = arith.extui %0 : i1 to i32
    %c0_i32_0 = arith.constant 0 : i32
    %2 = arith.cmpi ne, %1, %c0_i32_0 : i32
    scf.if %2 {
      %c0_8 = arith.constant 0 : index
      %c0_9 = arith.constant 0 : index
      %11 = vector.load %arg2[%c0_8, %c0_9] : memref<16x32xbf16, #tpu.memory_space<vmem>>, vector<16x32xbf16>
      %12 = arith.extf %11 : vector<16x32xbf16> to vector<16x32xf32>
      %cst_10 = arith.constant dense<0.000000e+00> : vector<16xf32>
      %13 = vector.multi_reduction <add>, %12, %cst_10 [1] : vector<16x32xf32> to vector<16xf32>
      %14 = vector.shape_cast %13 : vector<16xf32> to vector<16x1xf32>
      %cst_11 = arith.constant 3.200000e+01 : f32
      %15 = vector.broadcast %cst_11 : f32 to vector<16x1xf32>
      %16 = arith.divf %14, %15 : vector<16x1xf32>
      %17 = vector.broadcast %16 : vector<16x1xf32> to vector<16x32xf32>
      %18 = arith.subf %12, %17 : vector<16x32xf32>
      %19 = arith.mulf %18, %18 : vector<16x32xf32>
      %cst_12 = arith.constant dense<0.000000e+00> : vector<16xf32>
      %20 = vector.multi_reduction <add>, %19, %cst_12 [1] : vector<16x32xf32> to vector<16xf32>
      %21 = vector.shape_cast %20 : vector<16xf32> to vector<16x1xf32>
      %cst_13 = arith.constant 3.200000e+01 : f32
      %22 = vector.broadcast %cst_13 : f32 to vector<16x1xf32>
      %23 = arith.divf %21, %22 : vector<16x1xf32>
      %24 = vector.broadcast %16 : vector<16x1xf32> to vector<16x32xf32>
      %25 = arith.subf %12, %24 : vector<16x32xf32>
      %cst_14 = arith.constant 9.99999974E-6 : f32
      %26 = vector.broadcast %cst_14 : f32 to vector<16x1xf32>
      %27 = arith.addf %23, %26 : vector<16x1xf32>
      %28 = math.rsqrt %27 : vector<16x1xf32>
      %29 = vector.broadcast %28 : vector<16x1xf32> to vector<16x32xf32>
      %30 = arith.mulf %25, %29 : vector<16x32xf32>
      %c0_15 = arith.constant 0 : index
      %c0_16 = arith.constant 0 : index
      %31 = vector.load %arg3[%c0_15, %c0_16] : memref<1x32xf32, #tpu.memory_space<vmem>>, vector<1x32xf32>
      %32 = vector.broadcast %31 : vector<1x32xf32> to vector<16x32xf32>
      %33 = arith.mulf %30, %32 : vector<16x32xf32>
      %c0_17 = arith.constant 0 : index
      %c0_18 = arith.constant 0 : index
      %34 = vector.load %arg4[%c0_17, %c0_18] : memref<1x32xf32, #tpu.memory_space<vmem>>, vector<1x32xf32>
      %35 = vector.broadcast %34 : vector<1x32xf32> to vector<16x32xf32>
      %36 = arith.addf %33, %35 : vector<16x32xf32>
      %37 = arith.truncf %36 : vector<16x32xf32> to vector<16x32xbf16>
      %c0_19 = arith.constant 0 : index
      %c0_20 = arith.constant 0 : index
      %38 = vector.load %arg8[%c0_19, %c0_20] : memref<16x32xbf16, #tpu.memory_space<vmem>>, vector<16x32xbf16>
      tpu.vector_store %arg8[%c0_19, %c0_20], %37 {strides = array<i32>} : memref<16x32xbf16, #tpu.memory_space<vmem>>, vector<16x32xbf16>,
    } else {
    }
    %c0 = arith.constant 0 : index
    %c0_1 = arith.constant 0 : index
    %3 = vector.load %arg8[%c0, %c0_1] : memref<16x32xbf16, #tpu.memory_space<vmem>>, vector<16x32xbf16>
    %c0_2 = arith.constant 0 : index
    %c0_3 = arith.constant 0 : index
    %4 = vector.load %arg5[%c0_2, %c0_3] : memref<32x96xbf16, #tpu.memory_space<vmem>>, vector<32x96xbf16>
    %cst = arith.constant dense<0.000000e+00> : vector<16x96xf32>
    %5 = tpu.matmul %3, %4, %cst {dimension_numbers = #tpu.dot_dimension_numbers<[1], [0], [0], [1], [0, 0, 1, 1], [], []>} : vector<16x32xbf16>, vector<32x96xbf16>, vector<16x96xf32> -> vector<16x96xf32>
    %c0_4 = arith.constant 0 : index
    %c0_5 = arith.constant 0 : index
    %6 = vector.load %arg6[%c0_4, %c0_5] : memref<1x96xf32, #tpu.memory_space<vmem>>, vector<1x96xf32>
    %7 = vector.broadcast %6 : vector<1x96xf32> to vector<16x96xf32>
    %8 = arith.addf %5, %7 : vector<16x96xf32>
    %9 = arith.truncf %8 : vector<16x96xf32> to vector<16x96xbf16>
    %c0_6 = arith.constant 0 : index
    %c0_7 = arith.constant 0 : index
    %10 = vector.load %arg7[%c0_6, %c0_7] : memref<16x96xbf16, #tpu.memory_space<vmem>>, vector<16x96xbf16>
    tpu.vector_store %arg7[%c0_6, %c0_7], %9 {strides = array<i32>} : memref<16x96xbf16, #tpu.memory_space<vmem>>, vector<16x96xbf16>,
    return
  }
  func.func @transform_0(%arg0: i32, %arg1: i32) -> (i32, i32) {
    %c0_i32 = arith.constant 0 : i32
    %c0_i32_0 = arith.constant 0 : i32
    return %arg0, %c0_i32 : i32, i32
  }
  func.func @transform_1(%arg0: i32, %arg1: i32) -> (i32, i32) {
    %c0_i32 = arith.constant 0 : i32
    %c0_i32_0 = arith.constant 0 : i32
    %c0_i32_1 = arith.constant 0 : i32
    return %c0_i32, %c0_i32_0 : i32, i32
  }
  func.func @transform_2(%arg0: i32, %arg1: i32) -> (i32, i32) {
    %c0_i32 = arith.constant 0 : i32
    %c0_i32_0 = arith.constant 0 : i32
    %c0_i32_1 = arith.constant 0 : i32
    return %c0_i32, %c0_i32_0 : i32, i32
  }
  func.func @transform_3(%arg0: i32, %arg1: i32) -> (i32, i32) {
    %c0_i32 = arith.constant 0 : i32
    %c0_i32_0 = arith.constant 0 : i32
    return %c0_i32, %arg1 : i32, i32
  }
  func.func @transform_4(%arg0: i32, %arg1: i32) -> (i32, i32) {
    %c0_i32 = arith.constant 0 : i32
    %c0_i32_0 = arith.constant 0 : i32
    return %c0_i32, %arg1 : i32, i32
  }
  func.func @transform_5(%arg0: i32, %arg1: i32) -> (i32, i32) {
    %c0_i32 = arith.constant 0 : i32
    return %arg0, %arg1 : i32, i32
  }
}

module attributes {stable_mosaic.version = 11 : i64} {
  func.func @_matmul_residual_kernel(%arg0: i32, %arg1: i32, %arg2: i32, %arg3: memref<16x32xbf16, #tpu.memory_space<vmem>>, %arg4: memref<32x32xbf16, #tpu.memory_space<vmem>>, %arg5: memref<1x32xf32, #tpu.memory_space<vmem>>, %arg6: memref<16x32xbf16, #tpu.memory_space<vmem>>, %arg7: memref<16x32xbf16, #tpu.memory_space<vmem>>, %arg8: memref<16x32xf32, #tpu.memory_space<vmem>>) attributes {dimension_semantics = [#tpu.dimension_semantics<parallel>, #tpu.dimension_semantics<parallel>, #tpu.dimension_semantics<arbitrary>], iteration_bounds = array<i64: 1, 1, 1>, scalar_prefetch = 0 : i64, scratch_operands = 1 : i64, tpu.core_type = #tpu.core_type<tc>, window_params = [{transform_indices = @transform_0, window_bounds = array<i64: 16, 32>}, {transform_indices = @transform_1, window_bounds = array<i64: 32, 32>}, {transform_indices = @transform_2, window_bounds = array<i64: 1, 32>}, {transform_indices = @transform_3, window_bounds = array<i64: 16, 32>}, {transform_indices = @transform_4, window_bounds = array<i64: 16, 32>}]} {
    %c0_i32 = arith.constant 0 : i32
    %0 = arith.cmpi eq, %arg2, %c0_i32 : i32
    %1 = arith.extui %0 : i1 to i32
    %c0_i32_0 = arith.constant 0 : i32
    %2 = arith.cmpi ne, %1, %c0_i32_0 : i32
    scf.if %2 {
      %cst_10 = arith.constant 0.000000e+00 : f32
      %12 = vector.broadcast %cst_10 : f32 to vector<16x32xf32>
      %c0_11 = arith.constant 0 : index
      %c0_12 = arith.constant 0 : index
      %13 = vector.load %arg8[%c0_11, %c0_12] : memref<16x32xf32, #tpu.memory_space<vmem>>, vector<16x32xf32>
      tpu.vector_store %arg8[%c0_11, %c0_12], %12 {strides = array<i32>} : memref<16x32xf32, #tpu.memory_space<vmem>>, vector<16x32xf32>,
    } else {
    }
    %c0 = arith.constant 0 : index
    %c0_1 = arith.constant 0 : index
    %3 = vector.load %arg8[%c0, %c0_1] : memref<16x32xf32, #tpu.memory_space<vmem>>, vector<16x32xf32>
    %c0_2 = arith.constant 0 : index
    %c0_3 = arith.constant 0 : index
    %4 = vector.load %arg3[%c0_2, %c0_3] : memref<16x32xbf16, #tpu.memory_space<vmem>>, vector<16x32xbf16>
    %c0_4 = arith.constant 0 : index
    %c0_5 = arith.constant 0 : index
    %5 = vector.load %arg4[%c0_4, %c0_5] : memref<32x32xbf16, #tpu.memory_space<vmem>>, vector<32x32xbf16>
    %cst = arith.constant dense<0.000000e+00> : vector<16x32xf32>
    %6 = tpu.matmul %4, %5, %cst {dimension_numbers = #tpu.dot_dimension_numbers<[1], [0], [0], [1], [0, 0, 1, 1], [], []>} : vector<16x32xbf16>, vector<32x32xbf16>, vector<16x32xf32> -> vector<16x32xf32>
    %7 = arith.addf %3, %6 : vector<16x32xf32>
    %c0_6 = arith.constant 0 : index
    %c0_7 = arith.constant 0 : index
    %8 = vector.load %arg8[%c0_6, %c0_7] : memref<16x32xf32, #tpu.memory_space<vmem>>, vector<16x32xf32>
    tpu.vector_store %arg8[%c0_6, %c0_7], %7 {strides = array<i32>} : memref<16x32xf32, #tpu.memory_space<vmem>>, vector<16x32xf32>,
    %c0_i32_8 = arith.constant 0 : i32
    %9 = arith.cmpi eq, %arg2, %c0_i32_8 : i32
    %10 = arith.extui %9 : i1 to i32
    %c0_i32_9 = arith.constant 0 : i32
    %11 = arith.cmpi ne, %10, %c0_i32_9 : i32
    scf.if %11 {
      %c0_10 = arith.constant 0 : index
      %c0_11 = arith.constant 0 : index
      %12 = vector.load %arg8[%c0_10, %c0_11] : memref<16x32xf32, #tpu.memory_space<vmem>>, vector<16x32xf32>
      %c0_12 = arith.constant 0 : index
      %c0_13 = arith.constant 0 : index
      %13 = vector.load %arg5[%c0_12, %c0_13] : memref<1x32xf32, #tpu.memory_space<vmem>>, vector<1x32xf32>
      %14 = vector.broadcast %13 : vector<1x32xf32> to vector<16x32xf32>
      %15 = arith.addf %12, %14 : vector<16x32xf32>
      %c0_14 = arith.constant 0 : index
      %c0_15 = arith.constant 0 : index
      %16 = vector.load %arg6[%c0_14, %c0_15] : memref<16x32xbf16, #tpu.memory_space<vmem>>, vector<16x32xbf16>
      %17 = arith.extf %16 : vector<16x32xbf16> to vector<16x32xf32>
      %18 = arith.addf %15, %17 : vector<16x32xf32>
      %19 = arith.truncf %18 : vector<16x32xf32> to vector<16x32xbf16>
      %c0_16 = arith.constant 0 : index
      %c0_17 = arith.constant 0 : index
      %20 = vector.load %arg7[%c0_16, %c0_17] : memref<16x32xbf16, #tpu.memory_space<vmem>>, vector<16x32xbf16>
      tpu.vector_store %arg7[%c0_16, %c0_17], %19 {strides = array<i32>} : memref<16x32xbf16, #tpu.memory_space<vmem>>, vector<16x32xbf16>,
    } else {
    }
    return
  }
  func.func @transform_0(%arg0: i32, %arg1: i32, %arg2: i32) -> (i32, i32) {
    %c0_i32 = arith.constant 0 : i32
    return %arg0, %arg2 : i32, i32
  }
  func.func @transform_1(%arg0: i32, %arg1: i32, %arg2: i32) -> (i32, i32) {
    %c0_i32 = arith.constant 0 : i32
    return %arg2, %arg1 : i32, i32
  }
  func.func @transform_2(%arg0: i32, %arg1: i32, %arg2: i32) -> (i32, i32) {
    %c0_i32 = arith.constant 0 : i32
    %c0_i32_0 = arith.constant 0 : i32
    return %c0_i32, %arg1 : i32, i32
  }
  func.func @transform_3(%arg0: i32, %arg1: i32, %arg2: i32) -> (i32, i32) {
    %c0_i32 = arith.constant 0 : i32
    return %arg0, %arg1 : i32, i32
  }
  func.func @transform_4(%arg0: i32, %arg1: i32, %arg2: i32) -> (i32, i32) {
    %c0_i32 = arith.constant 0 : i32
    return %arg0, %arg1 : i32, i32
  }
}

module attributes {stable_mosaic.version = 11 : i64} {
  func.func @_ln_matmul_kernel(%arg0: i32, %arg1: i32, %arg2: memref<16x32xbf16, #tpu.memory_space<vmem>>, %arg3: memref<1x32xf32, #tpu.memory_space<vmem>>, %arg4: memref<1x32xf32, #tpu.memory_space<vmem>>, %arg5: memref<32x128xbf16, #tpu.memory_space<vmem>>, %arg6: memref<1x128xf32, #tpu.memory_space<vmem>>, %arg7: memref<16x128xbf16, #tpu.memory_space<vmem>>, %arg8: memref<16x32xbf16, #tpu.memory_space<vmem>>) attributes {dimension_semantics = [#tpu.dimension_semantics<parallel>, #tpu.dimension_semantics<arbitrary>], iteration_bounds = array<i64: 1, 1>, scalar_prefetch = 0 : i64, scratch_operands = 1 : i64, tpu.core_type = #tpu.core_type<tc>, window_params = [{transform_indices = @transform_0, window_bounds = array<i64: 16, 32>}, {pipeline_mode = #tpu.pipeline_mode<synchronous>, transform_indices = @transform_1, window_bounds = array<i64: 1, 32>}, {pipeline_mode = #tpu.pipeline_mode<synchronous>, transform_indices = @transform_2, window_bounds = array<i64: 1, 32>}, {transform_indices = @transform_3, window_bounds = array<i64: 32, 128>}, {transform_indices = @transform_4, window_bounds = array<i64: 1, 128>}, {transform_indices = @transform_5, window_bounds = array<i64: 16, 128>}]} {
    %c0_i32 = arith.constant 0 : i32
    %0 = arith.cmpi eq, %arg1, %c0_i32 : i32
    %1 = arith.extui %0 : i1 to i32
    %c0_i32_0 = arith.constant 0 : i32
    %2 = arith.cmpi ne, %1, %c0_i32_0 : i32
    scf.if %2 {
      %c0_12 = arith.constant 0 : index
      %c0_13 = arith.constant 0 : index
      %24 = vector.load %arg2[%c0_12, %c0_13] : memref<16x32xbf16, #tpu.memory_space<vmem>>, vector<16x32xbf16>
      %25 = arith.extf %24 : vector<16x32xbf16> to vector<16x32xf32>
      %cst_14 = arith.constant dense<0.000000e+00> : vector<16xf32>
      %26 = vector.multi_reduction <add>, %25, %cst_14 [1] : vector<16x32xf32> to vector<16xf32>
      %27 = vector.shape_cast %26 : vector<16xf32> to vector<16x1xf32>
      %cst_15 = arith.constant 3.200000e+01 : f32
      %28 = vector.broadcast %cst_15 : f32 to vector<16x1xf32>
      %29 = arith.divf %27, %28 : vector<16x1xf32>
      %30 = vector.broadcast %29 : vector<16x1xf32> to vector<16x32xf32>
      %31 = arith.subf %25, %30 : vector<16x32xf32>
      %32 = arith.mulf %31, %31 : vector<16x32xf32>
      %cst_16 = arith.constant dense<0.000000e+00> : vector<16xf32>
      %33 = vector.multi_reduction <add>, %32, %cst_16 [1] : vector<16x32xf32> to vector<16xf32>
      %34 = vector.shape_cast %33 : vector<16xf32> to vector<16x1xf32>
      %cst_17 = arith.constant 3.200000e+01 : f32
      %35 = vector.broadcast %cst_17 : f32 to vector<16x1xf32>
      %36 = arith.divf %34, %35 : vector<16x1xf32>
      %37 = vector.broadcast %29 : vector<16x1xf32> to vector<16x32xf32>
      %38 = arith.subf %25, %37 : vector<16x32xf32>
      %cst_18 = arith.constant 9.99999974E-6 : f32
      %39 = vector.broadcast %cst_18 : f32 to vector<16x1xf32>
      %40 = arith.addf %36, %39 : vector<16x1xf32>
      %41 = math.rsqrt %40 : vector<16x1xf32>
      %42 = vector.broadcast %41 : vector<16x1xf32> to vector<16x32xf32>
      %43 = arith.mulf %38, %42 : vector<16x32xf32>
      %c0_19 = arith.constant 0 : index
      %c0_20 = arith.constant 0 : index
      %44 = vector.load %arg3[%c0_19, %c0_20] : memref<1x32xf32, #tpu.memory_space<vmem>>, vector<1x32xf32>
      %45 = vector.broadcast %44 : vector<1x32xf32> to vector<16x32xf32>
      %46 = arith.mulf %43, %45 : vector<16x32xf32>
      %c0_21 = arith.constant 0 : index
      %c0_22 = arith.constant 0 : index
      %47 = vector.load %arg4[%c0_21, %c0_22] : memref<1x32xf32, #tpu.memory_space<vmem>>, vector<1x32xf32>
      %48 = vector.broadcast %47 : vector<1x32xf32> to vector<16x32xf32>
      %49 = arith.addf %46, %48 : vector<16x32xf32>
      %50 = arith.truncf %49 : vector<16x32xf32> to vector<16x32xbf16>
      %c0_23 = arith.constant 0 : index
      %c0_24 = arith.constant 0 : index
      %51 = vector.load %arg8[%c0_23, %c0_24] : memref<16x32xbf16, #tpu.memory_space<vmem>>, vector<16x32xbf16>
      tpu.vector_store %arg8[%c0_23, %c0_24], %50 {strides = array<i32>} : memref<16x32xbf16, #tpu.memory_space<vmem>>, vector<16x32xbf16>,
    } else {
    }
    %c0 = arith.constant 0 : index
    %c0_1 = arith.constant 0 : index
    %3 = vector.load %arg8[%c0, %c0_1] : memref<16x32xbf16, #tpu.memory_space<vmem>>, vector<16x32xbf16>
    %c0_2 = arith.constant 0 : index
    %c0_3 = arith.constant 0 : index
    %4 = vector.load %arg5[%c0_2, %c0_3] : memref<32x128xbf16, #tpu.memory_space<vmem>>, vector<32x128xbf16>
    %cst = arith.constant dense<0.000000e+00> : vector<16x128xf32>
    %5 = tpu.matmul %3, %4, %cst {dimension_numbers = #tpu.dot_dimension_numbers<[1], [0], [0], [1], [0, 0, 1, 1], [], []>} : vector<16x32xbf16>, vector<32x128xbf16>, vector<16x128xf32> -> vector<16x128xf32>
    %c0_4 = arith.constant 0 : index
    %c0_5 = arith.constant 0 : index
    %6 = vector.load %arg6[%c0_4, %c0_5] : memref<1x128xf32, #tpu.memory_space<vmem>>, vector<1x128xf32>
    %7 = vector.broadcast %6 : vector<1x128xf32> to vector<16x128xf32>
    %8 = arith.addf %5, %7 : vector<16x128xf32>
    %9 = arith.mulf %8, %8 : vector<16x128xf32>
    %10 = arith.mulf %8, %9 : vector<16x128xf32>
    %cst_6 = arith.constant 4.471500e-02 : f32
    %11 = vector.broadcast %cst_6 : f32 to vector<16x128xf32>
    %12 = arith.mulf %11, %10 : vector<16x128xf32>
    %13 = arith.addf %8, %12 : vector<16x128xf32>
    %cst_7 = arith.constant 0.797884583 : f32
    %14 = vector.broadcast %cst_7 : f32 to vector<16x128xf32>
    %15 = arith.mulf %14, %13 : vector<16x128xf32>
    %16 = math.tanh %15 : vector<16x128xf32>
    %cst_8 = arith.constant 1.000000e+00 : f32
    %17 = vector.broadcast %cst_8 : f32 to vector<16x128xf32>
    %18 = arith.addf %17, %16 : vector<16x128xf32>
    %cst_9 = arith.constant 5.000000e-01 : f32
    %19 = vector.broadcast %cst_9 : f32 to vector<16x128xf32>
    %20 = arith.mulf %19, %18 : vector<16x128xf32>
    %21 = arith.mulf %8, %20 : vector<16x128xf32>
    %22 = arith.truncf %21 : vector<16x128xf32> to vector<16x128xbf16>
    %c0_10 = arith.constant 0 : index
    %c0_11 = arith.constant 0 : index
    %23 = vector.load %arg7[%c0_10, %c0_11] : memref<16x128xbf16, #tpu.memory_space<vmem>>, vector<16x128xbf16>
    tpu.vector_store %arg7[%c0_10, %c0_11], %22 {strides = array<i32>} : memref<16x128xbf16, #tpu.memory_space<vmem>>, vector<16x128xbf16>,
    return
  }
  func.func @transform_0(%arg0: i32, %arg1: i32) -> (i32, i32) {
    %c0_i32 = arith.constant 0 : i32
    %c0_i32_0 = arith.constant 0 : i32
    return %arg0, %c0_i32 : i32, i32
  }
  func.func @transform_1(%arg0: i32, %arg1: i32) -> (i32, i32) {
    %c0_i32 = arith.constant 0 : i32
    %c0_i32_0 = arith.constant 0 : i32
    %c0_i32_1 = arith.constant 0 : i32
    return %c0_i32, %c0_i32_0 : i32, i32
  }
  func.func @transform_2(%arg0: i32, %arg1: i32) -> (i32, i32) {
    %c0_i32 = arith.constant 0 : i32
    %c0_i32_0 = arith.constant 0 : i32
    %c0_i32_1 = arith.constant 0 : i32
    return %c0_i32, %c0_i32_0 : i32, i32
  }
  func.func @transform_3(%arg0: i32, %arg1: i32) -> (i32, i32) {
    %c0_i32 = arith.constant 0 : i32
    %c0_i32_0 = arith.constant 0 : i32
    return %c0_i32, %arg1 : i32, i32
  }
  func.func @transform_4(%arg0: i32, %arg1: i32) -> (i32, i32) {
    %c0_i32 = arith.constant 0 : i32
    %c0_i32_0 = arith.constant 0 : i32
    return %c0_i32, %arg1 : i32, i32
  }
  func.func @transform_5(%arg0: i32, %arg1: i32) -> (i32, i32) {
    %c0_i32 = arith.constant 0 : i32
    return %arg0, %arg1 : i32, i32
  }
}

module attributes {stable_mosaic.version = 11 : i64} {
  func.func @_attention_kernel(%arg0: i32, %arg1: i32, %arg2: memref<1x8x32xbf16, #tpu.memory_space<vmem>>, %arg3: memref<1x8x32xbf16, #tpu.memory_space<vmem>>, %arg4: memref<1x8x32xbf16, #tpu.memory_space<vmem>>, %arg5: memref<1x1x8xi32, #tpu.memory_space<vmem>>, %arg6: memref<1x8x32xbf16, #tpu.memory_space<vmem>>, %arg7: memref<8x32xf32, #tpu.memory_space<vmem>>) attributes {dimension_semantics = [#tpu.dimension_semantics<parallel>, #tpu.dimension_semantics<parallel>], iteration_bounds = array<i64: 2, 1>, scalar_prefetch = 0 : i64, scratch_operands = 1 : i64, tpu.core_type = #tpu.core_type<tc>, window_params = [{transform_indices = @transform_0, window_bounds = array<i64: 1, 8, 32>}, {transform_indices = @transform_1, window_bounds = array<i64: 1, 8, 32>}, {transform_indices = @transform_2, window_bounds = array<i64: 1, 8, 32>}, {transform_indices = @transform_3, window_bounds = array<i64: 1, 1, 8>}, {transform_indices = @transform_4, window_bounds = array<i64: 1, 8, 32>}]} {
    %c8_i32 = arith.constant 8 : i32
    %0 = arith.muli %arg1, %c8_i32 : i32
    %1 = tpu.iota {dimensions = array<i32: 0>} : vector<8x8xi32>
    %2 = vector.broadcast %0 : i32 to vector<8x8xi32>
    %3 = arith.addi %2, %1 : vector<8x8xi32>
    %4 = tpu.iota {dimensions = array<i32: 1>} : vector<8x8xi32>
    %5 = arith.cmpi sle, %4, %3 : vector<8x8xi32>
    %c0 = arith.constant 0 : index
    %c0_0 = arith.constant 0 : index
    %c0_1 = arith.constant 0 : index
    %6 = vector.load %arg5[%c0, %c0_0, %c0_1] : memref<1x1x8xi32, #tpu.memory_space<vmem>>, vector<1x1x8xi32>
    %7 = vector.shape_cast %6 : vector<1x1x8xi32> to vector<1x8xi32>
    %c0_i32 = arith.constant 0 : i32
    %8 = vector.broadcast %c0_i32 : i32 to vector<1x8xi32>
    %9 = arith.cmpi sgt, %7, %8 : vector<1x8xi32>
    %10 = vector.broadcast %9 : vector<1x8xi1> to vector<8x8xi1>
    %11 = arith.andi %5, %10 : vector<8x8xi1>
    %cst = arith.constant 0.000000e+00 : f32
    %cst_2 = arith.constant -1.000000e+09 : f32
    %12 = vector.broadcast %cst : f32 to vector<8x8xf32>
    %13 = vector.broadcast %cst_2 : f32 to vector<8x8xf32>
    %14 = arith.select %11, %12, %13 : vector<8x8xi1>, vector<8x8xf32>
    %c0_3 = arith.constant 0 : index
    %c0_4 = arith.constant 0 : index
    %c0_5 = arith.constant 0 : index
    %15 = vector.load %arg2[%c0_3, %c0_4, %c0_5] : memref<1x8x32xbf16, #tpu.memory_space<vmem>>, vector<1x8x16xbf16>
    %16 = vector.shape_cast %15 : vector<1x8x16xbf16> to vector<8x16xbf16>
    %cst_6 = arith.constant 2.500000e-01 : bf16
    %17 = vector.broadcast %cst_6 : bf16 to vector<8x16xbf16>
    %18 = arith.mulf %16, %17 : vector<8x16xbf16>
    %c0_7 = arith.constant 0 : index
    %c0_8 = arith.constant 0 : index
    %c0_9 = arith.constant 0 : index
    %19 = vector.load %arg3[%c0_7, %c0_8, %c0_9] : memref<1x8x32xbf16, #tpu.memory_space<vmem>>, vector<1x8x16xbf16>
    %20 = vector.shape_cast %19 : vector<1x8x16xbf16> to vector<8x16xbf16>
    %c0_10 = arith.constant 0 : index
    %c0_11 = arith.constant 0 : index
    %c0_12 = arith.constant 0 : index
    %21 = vector.load %arg4[%c0_10, %c0_11, %c0_12] : memref<1x8x32xbf16, #tpu.memory_space<vmem>>, vector<1x8x16xbf16>
    %22 = vector.shape_cast %21 : vector<1x8x16xbf16> to vector<8x16xbf16>
    %cst_13 = arith.constant dense<0.000000e+00> : vector<8x8xf32>
    %23 = tpu.matmul %18, %20, %cst_13 {dimension_numbers = #tpu.dot_dimension_numbers<[1], [1], [0], [0], [0, 0, 1, 0], [], []>} : vector<8x16xbf16>, vector<8x16xbf16>, vector<8x8xf32> -> vector<8x8xf32>
    %24 = arith.addf %23, %14 : vector<8x8xf32>
    %cst_14 = arith.constant dense<0xFF800000> : vector<8xf32>
    %25 = vector.multi_reduction <maximumf>, %24, %cst_14 [1] : vector<8x8xf32> to vector<8xf32>
    %26 = vector.shape_cast %25 : vector<8xf32> to vector<8x1xf32>
    %27 = vector.broadcast %26 : vector<8x1xf32> to vector<8x8xf32>
    %28 = arith.subf %24, %27 : vector<8x8xf32>
    %29 = math.exp %28 : vector<8x8xf32>
    %cst_15 = arith.constant dense<0.000000e+00> : vector<8xf32>
    %30 = vector.multi_reduction <add>, %29, %cst_15 [1] : vector<8x8xf32> to vector<8xf32>
    %31 = vector.shape_cast %30 : vector<8xf32> to vector<8x1xf32>
    %32 = tpu.reciprocal %31 {approx = true} : vector<8x1xf32> -> vector<8x1xf32>
    %33 = vector.broadcast %32 : vector<8x1xf32> to vector<8x8xf32>
    %34 = arith.mulf %29, %33 : vector<8x8xf32>
    %35 = arith.truncf %34 : vector<8x8xf32> to vector<8x8xbf16>
    %cst_16 = arith.constant dense<0.000000e+00> : vector<8x16xf32>
    %36 = tpu.matmul %35, %22, %cst_16 {dimension_numbers = #tpu.dot_dimension_numbers<[1], [0], [0], [1], [0, 0, 1, 1], [], []>} : vector<8x8xbf16>, vector<8x16xbf16>, vector<8x16xf32> -> vector<8x16xf32>
    %c0_17 = arith.constant 0 : index
    %c0_18 = arith.constant 0 : index
    %37 = vector.load %arg7[%c0_17, %c0_18] : memref<8x32xf32, #tpu.memory_space<vmem>>, vector<8x16xf32>
    tpu.vector_store %arg7[%c0_17, %c0_18], %36 {strides = array<i32>} : memref<8x32xf32, #tpu.memory_space<vmem>>, vector<8x16xf32>,
    %c0_19 = arith.constant 0 : index
    %c0_20 = arith.constant 0 : index
    %c16 = arith.constant 16 : index
    %38 = vector.load %arg2[%c0_19, %c0_20, %c16] : memref<1x8x32xbf16, #tpu.memory_space<vmem>>, vector<1x8x16xbf16>
    %39 = vector.shape_cast %38 : vector<1x8x16xbf16> to vector<8x16xbf16>
    %cst_21 = arith.constant 2.500000e-01 : bf16
    %40 = vector.broadcast %cst_21 : bf16 to vector<8x16xbf16>
    %41 = arith.mulf %39, %40 : vector<8x16xbf16>
    %c0_22 = arith.constant 0 : index
    %c0_23 = arith.constant 0 : index
    %c16_24 = arith.constant 16 : index
    %42 = vector.load %arg3[%c0_22, %c0_23, %c16_24] : memref<1x8x32xbf16, #tpu.memory_space<vmem>>, vector<1x8x16xbf16>
    %43 = vector.shape_cast %42 : vector<1x8x16xbf16> to vector<8x16xbf16>
    %c0_25 = arith.constant 0 : index
    %c0_26 = arith.constant 0 : index
    %c16_27 = arith.constant 16 : index
    %44 = vector.load %arg4[%c0_25, %c0_26, %c16_27] : memref<1x8x32xbf16, #tpu.memory_space<vmem>>, vector<1x8x16xbf16>
    %45 = vector.shape_cast %44 : vector<1x8x16xbf16> to vector<8x16xbf16>
    %cst_28 = arith.constant dense<0.000000e+00> : vector<8x8xf32>
    %46 = tpu.matmul %41, %43, %cst_28 {dimension_numbers = #tpu.dot_dimension_numbers<[1], [1], [0], [0], [0, 0, 1, 0], [], []>} : vector<8x16xbf16>, vector<8x16xbf16>, vector<8x8xf32> -> vector<8x8xf32>
    %47 = arith.addf %46, %14 : vector<8x8xf32>
    %cst_29 = arith.constant dense<0xFF800000> : vector<8xf32>
    %48 = vector.multi_reduction <maximumf>, %47, %cst_29 [1] : vector<8x8xf32> to vector<8xf32>
    %49 = vector.shape_cast %48 : vector<8xf32> to vector<8x1xf32>
    %50 = vector.broadcast %49 : vector<8x1xf32> to vector<8x8xf32>
    %51 = arith.subf %47, %50 : vector<8x8xf32>
    %52 = math.exp %51 : vector<8x8xf32>
    %cst_30 = arith.constant dense<0.000000e+00> : vector<8xf32>
    %53 = vector.multi_reduction <add>, %52, %cst_30 [1] : vector<8x8xf32> to vector<8xf32>
    %54 = vector.shape_cast %53 : vector<8xf32> to vector<8x1xf32>
    %55 = tpu.reciprocal %54 {approx = true} : vector<8x1xf32> -> vector<8x1xf32>
    %56 = vector.broadcast %55 : vector<8x1xf32> to vector<8x8xf32>
    %57 = arith.mulf %52, %56 : vector<8x8xf32>
    %58 = arith.truncf %57 : vector<8x8xf32> to vector<8x8xbf16>
    %cst_31 = arith.constant dense<0.000000e+00> : vector<8x16xf32>
    %59 = tpu.matmul %58, %45, %cst_31 {dimension_numbers = #tpu.dot_dimension_numbers<[1], [0], [0], [1], [0, 0, 1, 1], [], []>} : vector<8x8xbf16>, vector<8x16xbf16>, vector<8x16xf32> -> vector<8x16xf32>
    %c0_32 = arith.constant 0 : index
    %c16_33 = arith.constant 16 : index
    %60 = vector.load %arg7[%c0_32, %c16_33] : memref<8x32xf32, #tpu.memory_space<vmem>>, vector<8x16xf32>
    tpu.vector_store %arg7[%c0_32, %c16_33], %59 {strides = array<i32>} : memref<8x32xf32, #tpu.memory_space<vmem>>, vector<8x16xf32>,
    %c0_34 = arith.constant 0 : index
    %c0_35 = arith.constant 0 : index
    %61 = vector.load %arg7[%c0_34, %c0_35] : memref<8x32xf32, #tpu.memory_space<vmem>>, vector<8x32xf32>
    %62 = arith.truncf %61 : vector<8x32xf32> to vector<8x32xbf16>
    %c0_36 = arith.constant 0 : index
    %c0_37 = arith.constant 0 : index
    %c0_38 = arith.constant 0 : index
    %63 = vector.load %arg6[%c0_36, %c0_37, %c0_38] : memref<1x8x32xbf16, #tpu.memory_space<vmem>>, vector<1x8x32xbf16>
    %64 = vector.shape_cast %63 : vector<1x8x32xbf16> to vector<8x32xbf16>
    %65 = vector.shape_cast %62 : vector<8x32xbf16> to vector<1x8x32xbf16>
    tpu.vector_store %arg6[%c0_36, %c0_37, %c0_38], %65 {strides = array<i32>} : memref<1x8x32xbf16, #tpu.memory_space<vmem>>, vector<1x8x32xbf16>,
    return
  }
  func.func @transform_0(%arg0: i32, %arg1: i32) -> (i32, i32, i32) {
    %c0_i32 = arith.constant 0 : i32
    %c0_i32_0 = arith.constant 0 : i32
    return %arg0, %arg1, %c0_i32 : i32, i32, i32
  }
  func.func @transform_1(%arg0: i32, %arg1: i32) -> (i32, i32, i32) {
    %c0_i32 = arith.constant 0 : i32
    %c0_i32_0 = arith.constant 0 : i32
    %c0_i32_1 = arith.constant 0 : i32
    return %arg0, %c0_i32, %c0_i32_0 : i32, i32, i32
  }
  func.func @transform_2(%arg0: i32, %arg1: i32) -> (i32, i32, i32) {
    %c0_i32 = arith.constant 0 : i32
    %c0_i32_0 = arith.constant 0 : i32
    %c0_i32_1 = arith.constant 0 : i32
    return %arg0, %c0_i32, %c0_i32_0 : i32, i32, i32
  }
  func.func @transform_3(%arg0: i32, %arg1: i32) -> (i32, i32, i32) {
    %c0_i32 = arith.constant 0 : i32
    %c0_i32_0 = arith.constant 0 : i32
    %c0_i32_1 = arith.constant 0 : i32
    return %arg0, %c0_i32, %c0_i32_0 : i32, i32, i32
  }
  func.func @transform_4(%arg0: i32, %arg1: i32) -> (i32, i32, i32) {
    %c0_i32 = arith.constant 0 : i32
    %c0_i32_0 = arith.constant 0 : i32
    return %arg0, %arg1, %c0_i32 : i32, i32, i32
  }
}

module attributes {stable_mosaic.version = 11 : i64} {
  func.func @_matmul_residual_kernel(%arg0: i32, %arg1: i32, %arg2: i32, %arg3: memref<16x128xbf16, #tpu.memory_space<vmem>>, %arg4: memref<128x32xbf16, #tpu.memory_space<vmem>>, %arg5: memref<1x32xf32, #tpu.memory_space<vmem>>, %arg6: memref<16x32xbf16, #tpu.memory_space<vmem>>, %arg7: memref<16x32xbf16, #tpu.memory_space<vmem>>, %arg8: memref<16x32xf32, #tpu.memory_space<vmem>>) attributes {dimension_semantics = [#tpu.dimension_semantics<parallel>, #tpu.dimension_semantics<parallel>, #tpu.dimension_semantics<arbitrary>], iteration_bounds = array<i64: 1, 1, 1>, scalar_prefetch = 0 : i64, scratch_operands = 1 : i64, tpu.core_type = #tpu.core_type<tc>, window_params = [{transform_indices = @transform_0, window_bounds = array<i64: 16, 128>}, {transform_indices = @transform_1, window_bounds = array<i64: 128, 32>}, {transform_indices = @transform_2, window_bounds = array<i64: 1, 32>}, {transform_indices = @transform_3, window_bounds = array<i64: 16, 32>}, {transform_indices = @transform_4, window_bounds = array<i64: 16, 32>}]} {
    %c0_i32 = arith.constant 0 : i32
    %0 = arith.cmpi eq, %arg2, %c0_i32 : i32
    %1 = arith.extui %0 : i1 to i32
    %c0_i32_0 = arith.constant 0 : i32
    %2 = arith.cmpi ne, %1, %c0_i32_0 : i32
    scf.if %2 {
      %cst_10 = arith.constant 0.000000e+00 : f32
      %12 = vector.broadcast %cst_10 : f32 to vector<16x32xf32>
      %c0_11 = arith.constant 0 : index
      %c0_12 = arith.constant 0 : index
      %13 = vector.load %arg8[%c0_11, %c0_12] : memref<16x32xf32, #tpu.memory_space<vmem>>, vector<16x32xf32>
      tpu.vector_store %arg8[%c0_11, %c0_12], %12 {strides = array<i32>} : memref<16x32xf32, #tpu.memory_space<vmem>>, vector<16x32xf32>,
    } else {
    }
    %c0 = arith.constant 0 : index
    %c0_1 = arith.constant 0 : index
    %3 = vector.load %arg8[%c0, %c0_1] : memref<16x32xf32, #tpu.memory_space<vmem>>, vector<16x32xf32>
    %c0_2 = arith.constant 0 : index
    %c0_3 = arith.constant 0 : index
    %4 = vector.load %arg3[%c0_2, %c0_3] : memref<16x128xbf16, #tpu.memory_space<vmem>>, vector<16x128xbf16>
    %c0_4 = arith.constant 0 : index
    %c0_5 = arith.constant 0 : index
    %5 = vector.load %arg4[%c0_4, %c0_5] : memref<128x32xbf16, #tpu.memory_space<vmem>>, vector<128x32xbf16>
    %cst = arith.constant dense<0.000000e+00> : vector<16x32xf32>
    %6 = tpu.matmul %4, %5, %cst {dimension_numbers = #tpu.dot_dimension_numbers<[1], [0], [0], [1], [0, 0, 1, 1], [], []>} : vector<16x128xbf16>, vector<128x32xbf16>, vector<16x32xf32> -> vector<16x32xf32>
    %7 = arith.addf %3, %6 : vector<16x32xf32>
    %c0_6 = arith.constant 0 : index
    %c0_7 = arith.constant 0 : index
    %8 = vector.load %arg8[%c0_6, %c0_7] : memref<16x32xf32, #tpu.memory_space<vmem>>, vector<16x32xf32>
    tpu.vector_store %arg8[%c0_6, %c0_7], %7 {strides = array<i32>} : memref<16x32xf32, #tpu.memory_space<vmem>>, vector<16x32xf32>,
    %c0_i32_8 = arith.constant 0 : i32
    %9 = arith.cmpi eq, %arg2, %c0_i32_8 : i32
    %10 = arith.extui %9 : i1 to i32
    %c0_i32_9 = arith.constant 0 : i32
    %11 = arith.cmpi ne, %10, %c0_i32_9 : i32
    scf.if %11 {
      %c0_10 = arith.constant 0 : index
      %c0_11 = arith.constant 0 : index
      %12 = vector.load %arg8[%c0_10, %c0_11] : memref<16x32xf32, #tpu.memory_space<vmem>>, vector<16x32xf32>
      %c0_12 = arith.constant 0 : index
      %c0_13 = arith.constant 0 : index
      %13 = vector.load %arg5[%c0_12, %c0_13] : memref<1x32xf32, #tpu.memory_space<vmem>>, vector<1x32xf32>
      %14 = vector.broadcast %13 : vector<1x32xf32> to vector<16x32xf32>
      %15 = arith.addf %12, %14 : vector<16x32xf32>
      %c0_14 = arith.constant 0 : index
      %c0_15 = arith.constant 0 : index
      %16 = vector.load %arg6[%c0_14, %c0_15] : memref<16x32xbf16, #tpu.memory_space<vmem>>, vector<16x32xbf16>
      %17 = arith.extf %16 : vector<16x32xbf16> to vector<16x32xf32>
      %18 = arith.addf %15, %17 : vector<16x32xf32>
      %19 = arith.truncf %18 : vector<16x32xf32> to vector<16x32xbf16>
      %c0_16 = arith.constant 0 : index
      %c0_17 = arith.constant 0 : index
      %20 = vector.load %arg7[%c0_16, %c0_17] : memref<16x32xbf16, #tpu.memory_space<vmem>>, vector<16x32xbf16>
      tpu.vector_store %arg7[%c0_16, %c0_17], %19 {strides = array<i32>} : memref<16x32xbf16, #tpu.memory_space<vmem>>, vector<16x32xbf16>,
    } else {
    }
    return
  }
  func.func @transform_0(%arg0: i32, %arg1: i32, %arg2: i32) -> (i32, i32) {
    %c0_i32 = arith.constant 0 : i32
    return %arg0, %arg2 : i32, i32
  }
  func.func @transform_1(%arg0: i32, %arg1: i32, %arg2: i32) -> (i32, i32) {
    %c0_i32 = arith.constant 0 : i32
    return %arg2, %arg1 : i32, i32
  }
  func.func @transform_2(%arg0: i32, %arg1: i32, %arg2: i32) -> (i32, i32) {
    %c0_i32 = arith.constant 0 : i32
    %c0_i32_0 = arith.constant 0 : i32
    return %c0_i32, %arg1 : i32, i32
  }
  func.func @transform_3(%arg0: i32, %arg1: i32, %arg2: i32) -> (i32, i32) {
    %c0_i32 = arith.constant 0 : i32
    return %arg0, %arg1 : i32, i32
  }
  func.func @transform_4(%arg0: i32, %arg1: i32, %arg2: i32) -> (i32, i32) {
    %c0_i32 = arith.constant 0 : i32
    return %arg0, %arg1 : i32, i32
  }
}

</mosaic_0001>

<llo_original>
// kernel: paraphrase_gpt_forward.10
$region0: #{paraphrase_gpt_forward.10}
  #allocation0 [shape = 'u32[]', space=smem, size = 0x4, offset = 0x4, fixed_abs, tag = 'smem constant byte address 0x4 - core index']
  #allocation1 [shape = 'u32[144,128]{1,0:T(1,128)}', space=vmem, size = 0x12000, scoped, tag = 'internal scratch']
  #allocation2 [shape = 'bf16[16,32]{1,0:T(8,128)(2,1)}', space=vmem, size = 0x1000, scoped, tag = 'scratch operand']
  %s0 = inlined_call_operand.vmem [shape: bf16[16,32], index: 0, kind: input, shape index: {}]
  %s1 = inlined_call_operand.vmem [shape: f32[1,32], index: 1, kind: input, shape index: {}]
  %s2 = inlined_call_operand.vmem [shape: f32[1,32], index: 2, kind: input, shape index: {}]
  %s3 = inlined_call_operand.vmem [shape: bf16[32,96], index: 3, kind: input, shape index: {}]
  %s4 = inlined_call_operand.vmem [shape: f32[1,96], index: 4, kind: input, shape index: {}]
  %s5 = inlined_call_operand.vmem [shape: bf16[16,96], index: 5, kind: output, shape index: {}]
  %s6 = sld [smem:[#allocation0]]
  $region34: #{paraphrase_gpt_forward.10} parent=0
    _
  %s8 = ssub.s32 1, %s6
  %s9 = scalar_select 0, %s8, %s6
  // Predicated region
  $region2: #{paraphrase_gpt_forward.10} parent=0 // pred_check
    _
  $region3: #{paraphrase_gpt_forward.10} parent=0 // pred_check_branch
    %11 = sbr.rel (0) target = $region5
  $region4: #{paraphrase_gpt_forward.10} parent=0 // pred_region
    _
  $region5: #{paraphrase_gpt_forward.10} parent=0 // pred_fallthru
    _
  // Predicated region
  $region6: #{paraphrase_gpt_forward.10} parent=0 // pred_check
    _
  $region7: #{paraphrase_gpt_forward.10} parent=0 // pred_check_branch
    %13 = sbr.rel (0) target = $region9
  $region8: #{paraphrase_gpt_forward.10} parent=0 // pred_region
    _
  $region9: #{paraphrase_gpt_forward.10} parent=0 // pred_fallthru
    _
  // Predicated region
  $region10: #{paraphrase_gpt_forward.10} parent=0 // pred_check
    _
  $region11: #{paraphrase_gpt_forward.10} parent=0 // pred_check_branch
    %15 = sbr.rel (0) target = $region13
  $region12: #{paraphrase_gpt_forward.10} parent=0 // pred_region
    _
  $region13: #{paraphrase_gpt_forward.10} parent=0 // pred_fallthru
    _
  // Predicated region
  $region14: #{paraphrase_gpt_forward.10} parent=0 // pred_check
    _
  $region15: #{paraphrase_gpt_forward.10} parent=0 // pred_check_branch
    %17 = sbr.rel (0) target = $region17
  $region16: #{paraphrase_gpt_forward.10} parent=0 // pred_region
    _
  $region17: #{paraphrase_gpt_forward.10} parent=0 // pred_fallthru
    _
  // Predicated region
  $region18: #{paraphrase_gpt_forward.10} parent=0 // pred_check
    _
  $region19: #{paraphrase_gpt_forward.10} parent=0 // pred_check_branch
    %19 = sbr.rel (0) target = $region21
  $region20: #{paraphrase_gpt_forward.10} parent=0 // pred_region
    _
  $region21: #{paraphrase_gpt_forward.10} parent=0 // pred_fallthru
    _
  %p21 = scmp.eq.s32.totalorder 0, 0
  // Predicated region
  $region22: #{paraphrase_gpt_forward.10} parent=0 // pred_check
    %p22 = pneg %p21
  $region23: #{paraphrase_gpt_forward.10} parent=0 // pred_check_branch
    %24 = sbr.rel (%p22) target = $region25
  $region24: #{paraphrase_gpt_forward.10} parent=0 // pred_region
    %v25 = vld [vmem:[%s0] sm:$0xf]
    %v26 = vld [vmem:[%s0 + $0x4] sm:$0xf]
    %v27 = vunpack.c.l.bf16 %v25
    %v28 = vunpack.c.l.bf16 %v26
    %vm29 = vcmask 261120
    %v30 = vsel %vm29, %v27, 0.0
    %31 = vadd.xlane.f32.xlu0 %v30
    %v32 = vpop.xlane.xlu0 %31
    %v33 = vsel %vm29, %v28, 0.0
    %34 = vadd.xlane.f32.xlu0 %v33
    %v35 = vpop.xlane.xlu0 %34
    %v36 = vrcp.pop 32.0
    %v37 = vmul.f32 %v32, %v36
    %v38 = vmul.f32 %v35, %v36
    %v39 = vsub.f32 %v27, %v37
    %v40 = vsub.f32 %v28, %v38
    %v41 = vmul.f32 %v39, %v39
    %v42 = vmul.f32 %v40, %v40
    %v43 = vsel %vm29, %v41, 0.0
    %44 = vadd.xlane.f32.xlu0 %v43
    %v45 = vpop.xlane.xlu0 %44
    %v46 = vsel %vm29, %v42, 0.0
    %47 = vadd.xlane.f32.xlu0 %v46
    %v48 = vpop.xlane.xlu0 %47
    %v49 = vmul.f32 %v45, %v36
    %v50 = vmul.f32 %v48, %v36
    %v51 = vadd.f32 %v49, 1e-05
    %v52 = vadd.f32 %v50, 1e-05
    %v53 = vrsqrt.pop %v51
    %v54 = vrsqrt.pop %v52
    %v55 = vmul.f32 %v39, %v53
    %v56 = vmul.f32 %v40, %v54
    %v57 = vld [vmem:[%s1] sm:$0x1]
    %v59 = vlaneseq
    %v60 = vshrl.u32 %v59, 7
    %v61 = vsub.s32 0, %v60
    %v62 = vrot.slane %v57, %v61
    %v64 = vmul.f32 %v55, %v62
    %v65 = vmul.f32 %v56, %v62
    %v66 = vld [vmem:[%s2] sm:$0x1]
    %v68 = vlaneseq
    %v69 = vshrl.u32 %v68, 7
    %v70 = vsub.s32 0, %v69
    %v71 = vrot.slane %v66, %v70
    %v73 = vadd.f32 %v64, %v71
    %v74 = vadd.f32 %v65, %v71
    %v75 = vpack.c.bf16 %v74, %v73
    %v77 = vunpack.c.l.b16 %v75
    %v78 = vunpack.c.h.b16 %v75
    %v79 = vpack.c.b16 %v77, %v77
    %v80 = vpack.c.b16 %v78, %v78
    %vm83 = vcmask 257024
    %84 = vst.msk [vmem:[#allocation2] sm:$0xf] %vm83, %v79
    %85 = vst.msk [vmem:[#allocation2 + $0x4] sm:$0xf] %vm83, %v80
  $region25: #{paraphrase_gpt_forward.10} parent=0 // pred_fallthru
    _
  %v86 = vld [vmem:[#allocation2] sm:$0xf]
  %v87 = vld [vmem:[#allocation2 + $0x4] sm:$0xf]
  %v88 = vld [vmem:[%s3] sm:$0xf]
  %v89 = vld [vmem:[%s3 + $0x4] sm:$0xf]
  %v90 = vld [vmem:[%s3 + $0x8] sm:$0xf]
  %v91 = vld [vmem:[%s3 + $0xc] sm:$0xf]
  %v92 = vld [vmem:[%s4] sm:$0x1]
  %v94 = vlaneseq
  %v95 = vshrl.u32 %v94, 7
  %v96 = vsub.s32 0, %v95
  %v97 = vrot.slane %v92, %v96
  %v101 = vunpack.c.l.b16 %v86
  %v102 = vunpack.c.l.b16 %v87
  %v103 = vpack.c.b16 %v102, %v101
  %v108 = vunpack.c.l.b16 %v88
  %v109 = vunpack.c.l.b16 %v89
  %v110 = vunpack.c.l.b16 %v90
  %v111 = vunpack.c.l.b16 %v91
  %v112 = vpack.c.b16 %v109, %v108
  %v113 = vpack.c.b16 %v111, %v110
  %vm116 = vcmask 261120
  %v118 = vsel %vm116, %v103, 0
  %120 = vmatprep.subr.bf16.mxu0 0
  %121 = vmatpush1.bf16.msra.mxu0 0
  %122 = vmatprep.subr.bf16.mxu0 0
  %123 = vmatpush1.bf16.msra.mxu0 0
  %124 = vmatprep.subr.bf16.mxu0 0
  %125 = vmatpush1.bf16.msra.mxu0 0
  %126 = vmatprep.subr.bf16.mxu0 0
  %127 = vmatpush1.bf16.msra.mxu0 0
  %128 = vmatprep.subr.bf16.mxu0 0
  %129 = vmatpush1.bf16.msra.mxu0 0
  %130 = vmatprep.subr.bf16.mxu0 0
  %131 = vmatpush1.bf16.msra.mxu0 0
  %132 = vmatprep.subr.bf16.mxu0 0
  %133 = vmatpush1.bf16.msra.mxu0 %v113
  %134 = vmatprep.subr.bf16.mxu0 0
  %135 = vmatpush1.bf16.msra.mxu0 %v112
  %136 = vmatprep.subr.bf16.mxu0 0
  %137 = vmatpush2.bf16.msra.mxu0 0
  %138 = vmatprep.subr.bf16.mxu0 0
  %139 = vmatpush2.bf16.msra.mxu0 0
  %140 = vmatprep.subr.bf16.mxu0 0
  %141 = vmatpush2.bf16.msra.mxu0 0
  %142 = vmatprep.subr.bf16.mxu0 0
  %143 = vmatpush2.bf16.msra.mxu0 0
  %144 = vmatprep.subr.bf16.mxu0 0
  %145 = vmatpush2.bf16.msra.mxu0 0
  %146 = vmatprep.subr.bf16.mxu0 0
  %147 = vmatpush2.bf16.msra.mxu0 0
  %148 = vmatprep.subr.bf16.mxu0 0
  %149 = vmatpush2.bf16.msra.mxu0 0
  %150 = vmatprep.subr.bf16.mxu0 0
  %151 = vmatpush2.bf16.msra.mxu0 0
  %152 = vmatprep.mubr.bf16.mxu0 0
  %153 = vmatmul.mubr.bf16.gmra.mxu0 %v118
  %v154 = vpop.f32.mrf.mxu0
  %v155 = vadd.f32 %v97, %v154
  %v156 = vpop.f32.mrf.mxu0
  %v157 = vpop.f32.mrf.mxu0
  %v158 = vadd.f32 %v97, %v157
  %v159 = vpop.f32.mrf.mxu0
  %160 = vdwg.mxu0
  %v161 = vpack.c.bf16 %v158, %v155
  %v163 = vunpack.c.l.b16 %v161
  %v164 = vunpack.c.h.b16 %v161
  %v165 = vpack.c.b16 %v163, %v163
  %v166 = vpack.c.b16 %v164, %v164
  %vm169 = vcmask 781312
  %170 = vst.msk [vmem:[%s5] sm:$0xf] %vm169, %v165
  %171 = vst.msk [vmem:[%s5 + $0x4] sm:$0xf] %vm169, %v166
  // Predicated region
  $region26: #{paraphrase_gpt_forward.10} parent=0 // pred_check
    _
  $region27: #{paraphrase_gpt_forward.10} parent=0 // pred_check_branch
    %173 = sbr.rel (0) target = $region29
  $region28: #{paraphrase_gpt_forward.10} parent=0 // pred_region
    _
  $region29: #{paraphrase_gpt_forward.10} parent=0 // pred_fallthru
    _
  // Predicated region
  $region30: #{paraphrase_gpt_forward.10} parent=0 // pred_check
    _
  $region31: #{paraphrase_gpt_forward.10} parent=0 // pred_check_branch
    %175 = sbr.rel (0) target = $region33
  $region32: #{paraphrase_gpt_forward.10} parent=0 // pred_region
    _
  $region33: #{paraphrase_gpt_forward.10} parent=0 // pred_fallthru
    _

// kernel: paraphrase_gpt_forward.12
$region0: #{paraphrase_gpt_forward.12}
  #allocation0 [shape = 'u32[]', space=smem, size = 0x4, offset = 0x4, fixed_abs, tag = 'smem constant byte address 0x4 - core index']
  #allocation1 [shape = 'u32[144,128]{1,0:T(1,128)}', space=vmem, size = 0x12000, scoped, tag = 'internal scratch']
  #allocation2 [shape = 'f32[16,32]{1,0:T(8,128)}', space=vmem, size = 0x2000, scoped, tag = 'scratch operand']
  %s0 = inlined_call_operand.vmem [shape: bf16[16,32], index: 0, kind: input, shape index: {}]
  %s1 = inlined_call_operand.vmem [shape: bf16[32,32], index: 1, kind: input, shape index: {}]
  %s2 = inlined_call_operand.vmem [shape: f32[1,32], index: 2, kind: input, shape index: {}]
  %s3 = inlined_call_operand.vmem [shape: bf16[16,32], index: 3, kind: input, shape index: {}]
  %s4 = inlined_call_operand.vmem [shape: bf16[16,32], index: 4, kind: output, shape index: {}]
  %s5 = sld [smem:[#allocation0]]
  $region34: #{paraphrase_gpt_forward.12} parent=0
    _
  %s7 = ssub.s32 1, %s5
  %s8 = scalar_select 0, %s7, %s5
  // Predicated region
  $region2: #{paraphrase_gpt_forward.12} parent=0 // pred_check
    _
  $region3: #{paraphrase_gpt_forward.12} parent=0 // pred_check_branch
    %10 = sbr.rel (0) target = $region5
  $region4: #{paraphrase_gpt_forward.12} parent=0 // pred_region
    _
  $region5: #{paraphrase_gpt_forward.12} parent=0 // pred_fallthru
    _
  // Predicated region
  $region6: #{paraphrase_gpt_forward.12} parent=0 // pred_check
    _
  $region7: #{paraphrase_gpt_forward.12} parent=0 // pred_check_branch
    %12 = sbr.rel (0) target = $region9
  $region8: #{paraphrase_gpt_forward.12} parent=0 // pred_region
    _
  $region9: #{paraphrase_gpt_forward.12} parent=0 // pred_fallthru
    _
  // Predicated region
  $region10: #{paraphrase_gpt_forward.12} parent=0 // pred_check
    _
  $region11: #{paraphrase_gpt_forward.12} parent=0 // pred_check_branch
    %14 = sbr.rel (0) target = $region13
  $region12: #{paraphrase_gpt_forward.12} parent=0 // pred_region
    _
  $region13: #{paraphrase_gpt_forward.12} parent=0 // pred_fallthru
    _
  // Predicated region
  $region14: #{paraphrase_gpt_forward.12} parent=0 // pred_check
    _
  $region15: #{paraphrase_gpt_forward.12} parent=0 // pred_check_branch
    %16 = sbr.rel (0) target = $region17
  $region16: #{paraphrase_gpt_forward.12} parent=0 // pred_region
    _
  $region17: #{paraphrase_gpt_forward.12} parent=0 // pred_fallthru
    _
  %p18 = scmp.eq.s32.totalorder 0, 0
  // Predicated region
  $region18: #{paraphrase_gpt_forward.12} parent=0 // pred_check
    %p19 = pneg %p18
  $region19: #{paraphrase_gpt_forward.12} parent=0 // pred_check_branch
    %21 = sbr.rel (%p19) target = $region21
  $region20: #{paraphrase_gpt_forward.12} parent=0 // pred_region
    %vm22 = vcmask 261120
    %23 = vst.msk [vmem:[#allocation2] sm:$0xff] %vm22, 0.0
    %24 = vst.msk [vmem:[#allocation2 + $0x8] sm:$0xff] %vm22, 0.0
  $region21: #{paraphrase_gpt_forward.12} parent=0 // pred_fallthru
    _
  %v25 = vld [vmem:[#allocation2] sm:$0xff]
  %v26 = vld [vmem:[#allocation2 + $0x8] sm:$0xff]
  %v27 = vld [vmem:[%s0] sm:$0xf]
  %v28 = vld [vmem:[%s0 + $0x4] sm:$0xf]
  %v29 = vld [vmem:[%s1] sm:$0xf]
  %v30 = vld [vmem:[%s1 + $0x4] sm:$0xf]
  %v31 = vld [vmem:[%s1 + $0x8] sm:$0xf]
  %v32 = vld [vmem:[%s1 + $0xc] sm:$0xf]
  %v35 = vunpack.c.l.b16 %v27
  %v36 = vunpack.c.l.b16 %v28
  %v37 = vpack.c.b16 %v36, %v35
  %v42 = vunpack.c.l.b16 %v29
  %v43 = vunpack.c.l.b16 %v30
  %v44 = vunpack.c.l.b16 %v31
  %v45 = vunpack.c.l.b16 %v32
  %v46 = vpack.c.b16 %v43, %v42
  %v47 = vpack.c.b16 %v45, %v44
  %vm50 = vcmask 261120
  %v52 = vsel %vm50, %v37, 0
  %54 = vmatprep.subr.bf16.mxu0 0
  %55 = vmatpush1.bf16.msra.mxu0 0
  %56 = vmatprep.subr.bf16.mxu0 0
  %57 = vmatpush1.bf16.msra.mxu0 0
  %58 = vmatprep.subr.bf16.mxu0 0
  %59 = vmatpush1.bf16.msra.mxu0 0
  %60 = vmatprep.subr.bf16.mxu0 0
  %61 = vmatpush1.bf16.msra.mxu0 0
  %62 = vmatprep.subr.bf16.mxu0 0
  %63 = vmatpush1.bf16.msra.mxu0 0
  %64 = vmatprep.subr.bf16.mxu0 0
  %65 = vmatpush1.bf16.msra.mxu0 0
  %66 = vmatprep.subr.bf16.mxu0 0
  %67 = vmatpush1.bf16.msra.mxu0 %v47
  %68 = vmatprep.subr.bf16.mxu0 0
  %69 = vmatpush1.bf16.msra.mxu0 %v46
  %70 = vmatprep.subr.bf16.mxu0 0
  %71 = vmatpush2.bf16.msra.mxu0 0
  %72 = vmatprep.subr.bf16.mxu0 0
  %73 = vmatpush2.bf16.msra.mxu0 0
  %74 = vmatprep.subr.bf16.mxu0 0
  %75 = vmatpush2.bf16.msra.mxu0 0
  %76 = vmatprep.subr.bf16.mxu0 0
  %77 = vmatpush2.bf16.msra.mxu0 0
  %78 = vmatprep.subr.bf16.mxu0 0
  %79 = vmatpush2.bf16.msra.mxu0 0
  %80 = vmatprep.subr.bf16.mxu0 0
  %81 = vmatpush2.bf16.msra.mxu0 0
  %82 = vmatprep.subr.bf16.mxu0 0
  %83 = vmatpush2.bf16.msra.mxu0 0
  %84 = vmatprep.subr.bf16.mxu0 0
  %85 = vmatpush2.bf16.msra.mxu0 0
  %86 = vmatprep.mubr.bf16.mxu0 0
  %87 = vmatmul.mubr.bf16.gmra.mxu0 %v52
  %v88 = vpop.f32.mrf.mxu0
  %v89 = vadd.f32 0.0, %v88
  %v90 = vpop.f32.mrf.mxu0
  %v91 = vpop.f32.mrf.mxu0
  %v92 = vadd.f32 0.0, %v91
  %v93 = vpop.f32.mrf.mxu0
  %94 = vdwg.mxu0
  %v95 = vadd.f32 %v25, %v89
  %v96 = vadd.f32 %v26, %v92
  %97 = vst.msk [vmem:[#allocation2] sm:$0xff] %vm50, %v95
  %98 = vst.msk [vmem:[#allocation2 + $0x8] sm:$0xff] %vm50, %v96
  // Predicated region
  $region22: #{paraphrase_gpt_forward.12} parent=0 // pred_check
    %p99 = pneg %p18
  $region23: #{paraphrase_gpt_forward.12} parent=0 // pred_check_branch
    %101 = sbr.rel (%p99) target = $region25
  $region24: #{paraphrase_gpt_forward.12} parent=0 // pred_region
    %v102 = vld [vmem:[#allocation2] sm:$0xff]
    %v103 = vld [vmem:[#allocation2 + $0x8] sm:$0xff]
    %v104 = vld [vmem:[%s2] sm:$0x1]
    %v106 = vlaneseq
    %v107 = vshrl.u32 %v106, 7
    %v108 = vsub.s32 0, %v107
    %v109 = vrot.slane %v104, %v108
    %v111 = vadd.f32 %v102, %v109
    %v112 = vadd.f32 %v103, %v109
    %v113 = vld [vmem:[%s3] sm:$0xf]
    %v114 = vld [vmem:[%s3 + $0x4] sm:$0xf]
    %v115 = vunpack.c.l.bf16 %v113
    %v116 = vunpack.c.l.bf16 %v114
    %v117 = vadd.f32 %v111, %v115
    %v118 = vadd.f32 %v112, %v116
    %v119 = vpack.c.bf16 %v118, %v117
    %v121 = vunpack.c.l.b16 %v119
    %v122 = vunpack.c.h.b16 %v119
    %v123 = vpack.c.b16 %v121, %v121
    %v124 = vpack.c.b16 %v122, %v122
    %vm127 = vcmask 257024
    %128 = vst.msk [vmem:[%s4] sm:$0xf] %vm127, %v123
    %129 = vst.msk [vmem:[%s4 + $0x4] sm:$0xf] %vm127, %v124
  $region25: #{paraphrase_gpt_forward.12} parent=0 // pred_fallthru
    _
  // Predicated region
  $region26: #{paraphrase_gpt_forward.12} parent=0 // pred_check
    _
  $region27: #{paraphrase_gpt_forward.12} parent=0 // pred_check_branch
    %131 = sbr.rel (0) target = $region29
  $region28: #{paraphrase_gpt_forward.12} parent=0 // pred_region
    _
  $region29: #{paraphrase_gpt_forward.12} parent=0 // pred_fallthru
    _
  // Predicated region
  $region30: #{paraphrase_gpt_forward.12} parent=0 // pred_check
    _
  $region31: #{paraphrase_gpt_forward.12} parent=0 // pred_check_branch
    %133 = sbr.rel (0) target = $region33
  $region32: #{paraphrase_gpt_forward.12} parent=0 // pred_region
    _
  $region33: #{paraphrase_gpt_forward.12} parent=0 // pred_fallthru
    _

// kernel: paraphrase_gpt_forward.13
$region0: #{paraphrase_gpt_forward.13}
  #allocation0 [shape = 'u32[]', space=smem, size = 0x4, offset = 0x4, fixed_abs, tag = 'smem constant byte address 0x4 - core index']
  #allocation1 [shape = 'u32[144,128]{1,0:T(1,128)}', space=vmem, size = 0x12000, scoped, tag = 'internal scratch']
  #allocation2 [shape = 'bf16[16,32]{1,0:T(8,128)(2,1)}', space=vmem, size = 0x1000, scoped, tag = 'scratch operand']
  %s0 = inlined_call_operand.vmem [shape: bf16[16,32], index: 0, kind: input, shape index: {}]
  %s1 = inlined_call_operand.vmem [shape: f32[1,32], index: 1, kind: input, shape index: {}]
  %s2 = inlined_call_operand.vmem [shape: f32[1,32], index: 2, kind: input, shape index: {}]
  %s3 = inlined_call_operand.vmem [shape: bf16[32,128], index: 3, kind: input, shape index: {}]
  %s4 = inlined_call_operand.vmem [shape: f32[1,128], index: 4, kind: input, shape index: {}]
  %s5 = inlined_call_operand.vmem [shape: bf16[16,128], index: 5, kind: output, shape index: {}]
  %s6 = sld [smem:[#allocation0]]
  $region34: #{paraphrase_gpt_forward.13} parent=0
    _
  %s8 = ssub.s32 1, %s6
  %s9 = scalar_select 0, %s8, %s6
  // Predicated region
  $region2: #{paraphrase_gpt_forward.13} parent=0 // pred_check
    _
  $region3: #{paraphrase_gpt_forward.13} parent=0 // pred_check_branch
    %11 = sbr.rel (0) target = $region5
  $region4: #{paraphrase_gpt_forward.13} parent=0 // pred_region
    _
  $region5: #{paraphrase_gpt_forward.13} parent=0 // pred_fallthru
    _
  // Predicated region
  $region6: #{paraphrase_gpt_forward.13} parent=0 // pred_check
    _
  $region7: #{paraphrase_gpt_forward.13} parent=0 // pred_check_branch
    %13 = sbr.rel (0) target = $region9
  $region8: #{paraphrase_gpt_forward.13} parent=0 // pred_region
    _
  $region9: #{paraphrase_gpt_forward.13} parent=0 // pred_fallthru
    _
  // Predicated region
  $region10: #{paraphrase_gpt_forward.13} parent=0 // pred_check
    _
  $region11: #{paraphrase_gpt_forward.13} parent=0 // pred_check_branch
    %15 = sbr.rel (0) target = $region13
  $region12: #{paraphrase_gpt_forward.13} parent=0 // pred_region
    _
  $region13: #{paraphrase_gpt_forward.13} parent=0 // pred_fallthru
    _
  // Predicated region
  $region14: #{paraphrase_gpt_forward.13} parent=0 // pred_check
    _
  $region15: #{paraphrase_gpt_forward.13} parent=0 // pred_check_branch
    %17 = sbr.rel (0) target = $region17
  $region16: #{paraphrase_gpt_forward.13} parent=0 // pred_region
    _
  $region17: #{paraphrase_gpt_forward.13} parent=0 // pred_fallthru
    _
  // Predicated region
  $region18: #{paraphrase_gpt_forward.13} parent=0 // pred_check
    _
  $region19: #{paraphrase_gpt_forward.13} parent=0 // pred_check_branch
    %19 = sbr.rel (0) target = $region21
  $region20: #{paraphrase_gpt_forward.13} parent=0 // pred_region
    _
  $region21: #{paraphrase_gpt_forward.13} parent=0 // pred_fallthru
    _
  %p21 = scmp.eq.s32.totalorder 0, 0
  // Predicated region
  $region22: #{paraphrase_gpt_forward.13} parent=0 // pred_check
    %p22 = pneg %p21
  $region23: #{paraphrase_gpt_forward.13} parent=0 // pred_check_branch
    %24 = sbr.rel (%p22) target = $region25
  $region24: #{paraphrase_gpt_forward.13} parent=0 // pred_region
    %v25 = vld [vmem:[%s0] sm:$0xf]
    %v26 = vld [vmem:[%s0 + $0x4] sm:$0xf]
    %v27 = vunpack.c.l.bf16 %v25
    %v28 = vunpack.c.l.bf16 %v26
    %vm29 = vcmask 261120
    %v30 = vsel %vm29, %v27, 0.0
    %31 = vadd.xlane.f32.xlu0 %v30
    %v32 = vpop.xlane.xlu0 %31
    %v33 = vsel %vm29, %v28, 0.0
    %34 = vadd.xlane.f32.xlu0 %v33
    %v35 = vpop.xlane.xlu0 %34
    %v36 = vrcp.pop 32.0
    %v37 = vmul.f32 %v32, %v36
    %v38 = vmul.f32 %v35, %v36
    %v39 = vsub.f32 %v27, %v37
    %v40 = vsub.f32 %v28, %v38
    %v41 = vmul.f32 %v39, %v39
    %v42 = vmul.f32 %v40, %v40
    %v43 = vsel %vm29, %v41, 0.0
    %44 = vadd.xlane.f32.xlu0 %v43
    %v45 = vpop.xlane.xlu0 %44
    %v46 = vsel %vm29, %v42, 0.0
    %47 = vadd.xlane.f32.xlu0 %v46
    %v48 = vpop.xlane.xlu0 %47
    %v49 = vmul.f32 %v45, %v36
    %v50 = vmul.f32 %v48, %v36
    %v51 = vadd.f32 %v49, 1e-05
    %v52 = vadd.f32 %v50, 1e-05
    %v53 = vrsqrt.pop %v51
    %v54 = vrsqrt.pop %v52
    %v55 = vmul.f32 %v39, %v53
    %v56 = vmul.f32 %v40, %v54
    %v57 = vld [vmem:[%s1] sm:$0x1]
    %v59 = vlaneseq
    %v60 = vshrl.u32 %v59, 7
    %v61 = vsub.s32 0, %v60
    %v62 = vrot.slane %v57, %v61
    %v64 = vmul.f32 %v55, %v62
    %v65 = vmul.f32 %v56, %v62
    %v66 = vld [vmem:[%s2] sm:$0x1]
    %v68 = vlaneseq
    %v69 = vshrl.u32 %v68, 7
    %v70 = vsub.s32 0, %v69
    %v71 = vrot.slane %v66, %v70
    %v73 = vadd.f32 %v64, %v71
    %v74 = vadd.f32 %v65, %v71
    %v75 = vpack.c.bf16 %v74, %v73
    %v77 = vunpack.c.l.b16 %v75
    %v78 = vunpack.c.h.b16 %v75
    %v79 = vpack.c.b16 %v77, %v77
    %v80 = vpack.c.b16 %v78, %v78
    %vm83 = vcmask 257024
    %84 = vst.msk [vmem:[#allocation2] sm:$0xf] %vm83, %v79
    %85 = vst.msk [vmem:[#allocation2 + $0x4] sm:$0xf] %vm83, %v80
  $region25: #{paraphrase_gpt_forward.13} parent=0 // pred_fallthru
    _
  %v86 = vld [vmem:[#allocation2] sm:$0xf]
  %v87 = vld [vmem:[#allocation2 + $0x4] sm:$0xf]
  %v88 = vld [vmem:[%s3] sm:$0xf]
  %v89 = vld [vmem:[%s3 + $0x4] sm:$0xf]
  %v90 = vld [vmem:[%s3 + $0x8] sm:$0xf]
  %v91 = vld [vmem:[%s3 + $0xc] sm:$0xf]
  %v92 = vld [vmem:[%s4] sm:$0x1]
  %v94 = vlaneseq
  %v95 = vshrl.u32 %v94, 7
  %v96 = vsub.s32 0, %v95
  %v97 = vrot.slane %v92, %v96
  %v101 = vunpack.c.l.b16 %v86
  %v102 = vunpack.c.l.b16 %v87
  %v103 = vpack.c.b16 %v102, %v101
  %v108 = vunpack.c.l.b16 %v88
  %v109 = vunpack.c.l.b16 %v89
  %v110 = vunpack.c.l.b16 %v90
  %v111 = vunpack.c.l.b16 %v91
  %v112 = vpack.c.b16 %v109, %v108
  %v113 = vpack.c.b16 %v111, %v110
  %vm116 = vcmask 261120
  %v118 = vsel %vm116, %v103, 0
  %120 = vmatprep.subr.bf16.mxu0 0
  %121 = vmatpush1.bf16.msra.mxu0 0
  %122 = vmatprep.subr.bf16.mxu0 0
  %123 = vmatpush1.bf16.msra.mxu0 0
  %124 = vmatprep.subr.bf16.mxu0 0
  %125 = vmatpush1.bf16.msra.mxu0 0
  %126 = vmatprep.subr.bf16.mxu0 0
  %127 = vmatpush1.bf16.msra.mxu0 0
  %128 = vmatprep.subr.bf16.mxu0 0
  %129 = vmatpush1.bf16.msra.mxu0 0
  %130 = vmatprep.subr.bf16.mxu0 0
  %131 = vmatpush1.bf16.msra.mxu0 0
  %132 = vmatprep.subr.bf16.mxu0 0
  %133 = vmatpush1.bf16.msra.mxu0 %v113
  %134 = vmatprep.subr.bf16.mxu0 0
  %135 = vmatpush1.bf16.msra.mxu0 %v112
  %136 = vmatprep.subr.bf16.mxu0 0
  %137 = vmatpush2.bf16.msra.mxu0 0
  %138 = vmatprep.subr.bf16.mxu0 0
  %139 = vmatpush2.bf16.msra.mxu0 0
  %140 = vmatprep.subr.bf16.mxu0 0
  %141 = vmatpush2.bf16.msra.mxu0 0
  %142 = vmatprep.subr.bf16.mxu0 0
  %143 = vmatpush2.bf16.msra.mxu0 0
  %144 = vmatprep.subr.bf16.mxu0 0
  %145 = vmatpush2.bf16.msra.mxu0 0
  %146 = vmatprep.subr.bf16.mxu0 0
  %147 = vmatpush2.bf16.msra.mxu0 0
  %148 = vmatprep.subr.bf16.mxu0 0
  %149 = vmatpush2.bf16.msra.mxu0 0
  %150 = vmatprep.subr.bf16.mxu0 0
  %151 = vmatpush2.bf16.msra.mxu0 0
  %152 = vmatprep.mubr.bf16.mxu0 0
  %153 = vmatmul.mubr.bf16.gmra.mxu0 %v118
  %v154 = vpop.f32.mrf.mxu0
  %v155 = vadd.f32 %v97, %v154
  %v156 = vpop.f32.mrf.mxu0
  %v157 = vpop.f32.mrf.mxu0
  %v158 = vadd.f32 %v97, %v157
  %v159 = vpop.f32.mrf.mxu0
  %160 = vdwg.mxu0
  %v161 = vmul.f32 %v155, %v155
  %v162 = vmul.f32 %v158, %v158
  %v163 = vmul.f32 %v155, %v161
  %v164 = vmul.f32 %v158, %v162
  %v165 = vmul.f32 %v163, 0.044715
  %v166 = vmul.f32 %v164, 0.044715
  %v167 = vadd.f32 %v155, %v165
  %v168 = vadd.f32 %v158, %v166
  %v169 = vmul.f32 %v167, 0.7978846
  %v170 = vmul.f32 %v168, 0.7978846
  %v171 = vtanh.pop %v169
  %v172 = vtanh.pop %v170
  %v173 = vadd.f32 %v171, 1.0
  %v174 = vadd.f32 %v172, 1.0
  %v175 = vmul.f32 %v173, 0.5
  %v176 = vmul.f32 %v174, 0.5
  %v177 = vmul.f32 %v155, %v175
  %v178 = vmul.f32 %v158, %v176
  %v179 = vpack.c.bf16 %v178, %v177
  %v181 = vunpack.c.l.b16 %v179
  %v182 = vunpack.c.h.b16 %v179
  %v183 = vpack.c.b16 %v181, %v181
  %v184 = vpack.c.b16 %v182, %v182
  %187 = vst [vmem:[%s5] sm:$0xf] %v183
  %188 = vst [vmem:[%s5 + $0x4] sm:$0xf] %v184
  // Predicated region
  $region26: #{paraphrase_gpt_forward.13} parent=0 // pred_check
    _
  $region27: #{paraphrase_gpt_forward.13} parent=0 // pred_check_branch
    %190 = sbr.rel (0) target = $region29
  $region28: #{paraphrase_gpt_forward.13} parent=0 // pred_region
    _
  $region29: #{paraphrase_gpt_forward.13} parent=0 // pred_fallthru
    _
  // Predicated region
  $region30: #{paraphrase_gpt_forward.13} parent=0 // pred_check
    _
  $region31: #{paraphrase_gpt_forward.13} parent=0 // pred_check_branch
    %192 = sbr.rel (0) target = $region33
  $region32: #{paraphrase_gpt_forward.13} parent=0 // pred_region
    _
  $region33: #{paraphrase_gpt_forward.13} parent=0 // pred_fallthru
    _

// kernel: paraphrase_gpt_forward.11
$region0: #{paraphrase_gpt_forward.11}
  #allocation0 [shape = 'u32[]', space=smem, size = 0x4, offset = 0x4, fixed_abs, tag = 'smem constant byte address 0x4 - core index']
  #allocation1 [shape = 'u32[144,128]{1,0:T(1,128)}', space=vmem, size = 0x12000, scoped, tag = 'internal scratch']
  #allocation2 [shape = 'f32[8,32]{1,0:T(8,128)}', space=vmem, size = 0x1000, scoped, tag = 'scratch operand']
  %s0 = inlined_call_operand.vmem [shape: bf16[2,8,32], index: 0, kind: input, shape index: {}]
  %s1 = inlined_call_operand.vmem [shape: bf16[2,8,32], index: 1, kind: input, shape index: {}]
  %s2 = inlined_call_operand.vmem [shape: bf16[2,8,32], index: 2, kind: input, shape index: {}]
  %s3 = inlined_call_operand.vmem [shape: s32[2,1,8], index: 3, kind: input, shape index: {}]
  %s4 = inlined_call_operand.vmem [shape: bf16[2,8,32], index: 4, kind: output, shape index: {}]
  %s5 = sld [smem:[#allocation0]]
  $region49: #{paraphrase_gpt_forward.11} parent=0
    _
  %s7 = ssub.s32 1, %s5
  %s8 = scalar_select 0, %s7, %s5
  loop: start=0, step=1, limit=4
  $region2: #{paraphrase_gpt_forward.11} parent=0 // loop_pre_header
    _
  $region3: #{paraphrase_gpt_forward.11} parent=0 // loop_header
    %s10 = sphi 0, %s14
    %p11 = scmp.ge.s32.totalorder %s10, 4
    %s17 = sphi 0, %s29
    %s18 = sphi 0, %s25
    %s19 = sphi 0, %s17
    %s20 = sphi 0, %s18
    %s21 = sphi 0, %s19
    %s22 = sphi 0, %s20
    %s34 = sphi 0, %s36
    %s37 = sphi 0, %s34
    %s38 = sphi 0, %s37
    %s54 = sphi 0, %s38
    %s60 = sphi 0, %s62
    %s63 = sphi 0, %s60
    %s64 = sphi 0, %s63
    %s80 = sphi 0, %s64
    %s86 = sphi 0, %s88
    %s89 = sphi 0, %s86
    %s90 = sphi 0, %s89
    %s106 = sphi 0, %s90
    %s112 = sphi 0, %s114
    %s115 = sphi 0, %s112
    %s116 = sphi 0, %s115
    %s132 = sphi 0, %s116
    %s140 = sphi 0, %s142
    %s143 = sphi 0, %s140
    %s144 = sphi 0, %s143
    %s160 = sphi 0, %s144
  $region4: #{paraphrase_gpt_forward.11} parent=0 // loop_header_branch
    %13 = sbr.rel (%p11) target = $region8
  $region5: #{paraphrase_gpt_forward.11} parent=0 // loop_body
    %s15 = ssub.s32 %s10, 1
    %s16 = ssub.s32 %s10, 2
    %s23 = sadd.s32 1, %s18
    %p24 = scmp.ge.s32.totalorder %s23, 1
    %s25 = scalar_select %p24, 0, %s23
    %s26 = sadd.s32 1, %s17
    %s27 = scalar_select %p24, %s26, %s17
    %p28 = scmp.ge.s32.totalorder %s27, 2
    %s29 = scalar_select %p28, 0, %s27
    %s30 = ssub.s32 %s17, %s29
    %s31 = ssub.s32 %s18, %s25
    %s32 = sor.u32 %s30, %s31
    %p33 = scmp.eq.s32.totalorder %s32, 0
    %s35 = sadd.s32 %s34, 1
    %s36 = scalar_select %p33, %s34, %s35
    %p39 = pneg %p33
    %p40 = scmp.eq.s32.totalorder %s10, 1
    %p41 = por %p39, %p40
    %p42 = scmp.ne.s32.totalorder %s34, %s37
    %p43 = scmp.eq.s32.totalorder %s10, 0
    %p44 = por %p42, %p43
    %p45 = scmp.ne.s32.totalorder %s34, %s37
    %p46 = scmp.eq.s32.totalorder %s15, 1
    %p47 = por %p45, %p46
    %p48 = scmp.ne.s32.totalorder %s37, %s38
    %p49 = scmp.eq.s32.totalorder %s15, 0
    %p50 = por %p48, %p49
    %p51 = scmp.ne.s32.totalorder %s37, %s38
    %p52 = scmp.eq.s32.totalorder %s16, 1
    %p53 = por %p51, %p52
    %p55 = scmp.ne.s32.totalorder %s38, %s54
    %p56 = scmp.eq.s32.totalorder %s16, 0
    %p57 = por %p55, %p56
    %s58 = ssub.s32 %s17, %s29
    %p59 = scmp.eq.s32.totalorder %s58, 0
    %s61 = sadd.s32 %s60, 1
    %s62 = scalar_select %p59, %s60, %s61
    %p65 = pneg %p59
    %p66 = scmp.eq.s32.totalorder %s10, 1
    %p67 = por %p65, %p66
    %p68 = scmp.ne.s32.totalorder %s60, %s63
    %p69 = scmp.eq.s32.totalorder %s10, 0
    %p70 = por %p68, %p69
    %p71 = scmp.ne.s32.totalorder %s60, %s63
    %p72 = scmp.eq.s32.totalorder %s15, 1
    %p73 = por %p71, %p72
    %p74 = scmp.ne.s32.totalorder %s63, %s64
    %p75 = scmp.eq.s32.totalorder %s15, 0
    %p76 = por %p74, %p75
    %p77 = scmp.ne.s32.totalorder %s63, %s64
    %p78 = scmp.eq.s32.totalorder %s16, 1
    %p79 = por %p77, %p78
    %p81 = scmp.ne.s32.totalorder %s64, %s80
    %p82 = scmp.eq.s32.totalorder %s16, 0
    %p83 = por %p81, %p82
    %s84 = ssub.s32 %s17, %s29
    %p85 = scmp.eq.s32.totalorder %s84, 0
    %s87 = sadd.s32 %s86, 1
    %s88 = scalar_select %p85, %s86, %s87
    %p91 = pneg %p85
    %p92 = scmp.eq.s32.totalorder %s10, 1
    %p93 = por %p91, %p92
    %p94 = scmp.ne.s32.totalorder %s86, %s89
    %p95 = scmp.eq.s32.totalorder %s10, 0
    %p96 = por %p94, %p95
    %p97 = scmp.ne.s32.totalorder %s86, %s89
    %p98 = scmp.eq.s32.totalorder %s15, 1
    %p99 = por %p97, %p98
    %p100 = scmp.ne.s32.totalorder %s89, %s90
    %p101 = scmp.eq.s32.totalorder %s15, 0
    %p102 = por %p100, %p101
    %p103 = scmp.ne.s32.totalorder %s89, %s90
    %p104 = scmp.eq.s32.totalorder %s16, 1
    %p105 = por %p103, %p104
    %p107 = scmp.ne.s32.totalorder %s90, %s106
    %p108 = scmp.eq.s32.totalorder %s16, 0
    %p109 = por %p107, %p108
    %s110 = ssub.s32 %s17, %s29
    %p111 = scmp.eq.s32.totalorder %s110, 0
    %s113 = sadd.s32 %s112, 1
    %s114 = scalar_select %p111, %s112, %s113
    %p117 = pneg %p111
    %p118 = scmp.eq.s32.totalorder %s10, 1
    %p119 = por %p117, %p118
    %p120 = scmp.ne.s32.totalorder %s112, %s115
    %p121 = scmp.eq.s32.totalorder %s10, 0
    %p122 = por %p120, %p121
    %p123 = scmp.ne.s32.totalorder %s112, %s115
    %p124 = scmp.eq.s32.totalorder %s15, 1
    %p125 = por %p123, %p124
    %p126 = scmp.ne.s32.totalorder %s115, %s116
    %p127 = scmp.eq.s32.totalorder %s15, 0
    %p128 = por %p126, %p127
    %p129 = scmp.ne.s32.totalorder %s115, %s116
    %p130 = scmp.eq.s32.totalorder %s16, 1
    %p131 = por %p129, %p130
    %p133 = scmp.ne.s32.totalorder %s116, %s132
    %p134 = scmp.eq.s32.totalorder %s16, 0
    %p135 = por %p133, %p134
    %s136 = ssub.s32 %s17, %s29
    %s137 = ssub.s32 %s18, %s25
    %s138 = sor.u32 %s136, %s137
    %p139 = scmp.eq.s32.totalorder %s138, 0
    %s141 = sadd.s32 %s140, 1
    %s142 = scalar_select %p139, %s140, %s141
    %p145 = pneg %p139
    %p146 = scmp.eq.s32.totalorder %s10, 1
    %p147 = por %p145, %p146
    %p148 = scmp.ne.s32.totalorder %s140, %s143
    %p149 = scmp.eq.s32.totalorder %s10, 0
    %p150 = por %p148, %p149
    %p151 = scmp.ne.s32.totalorder %s140, %s143
    %p152 = scmp.eq.s32.totalorder %s15, 1
    %p153 = por %p151, %p152
    %p154 = scmp.ne.s32.totalorder %s143, %s144
    %p155 = scmp.eq.s32.totalorder %s15, 0
    %p156 = por %p154, %p155
    %p157 = scmp.ne.s32.totalorder %s143, %s144
    %p158 = scmp.eq.s32.totalorder %s16, 1
    %p159 = por %p157, %p158
    %p161 = scmp.ne.s32.totalorder %s144, %s160
    %p162 = scmp.eq.s32.totalorder %s16, 0
    %p163 = por %p161, %p162
    %p164 = scmp.le.s32.totalorder 1, %s10
    %p165 = scmp.lt.s32.totalorder %s10, 3
    %p166 = pnand %p164, %p165
    %p167 = pneg %p166
    // Predicated region
    $region9: #{paraphrase_gpt_forward.11} parent=5 // pred_check
      _
    $region10: #{paraphrase_gpt_forward.11} parent=5 // pred_check_branch
      %169 = sbr.rel (%p166) target = $region12
    $region11: #{paraphrase_gpt_forward.11} parent=5 // pred_region
      %s170 = ssub.s32 %s10, 1
    $region12: #{paraphrase_gpt_forward.11} parent=5 // pred_fallthru
      _
    %p171 = scmp.lt.s32.totalorder %s10, 2
    // Predicated region
    $region13: #{paraphrase_gpt_forward.11} parent=5 // pred_check
      %p172 = pneg %p171
    $region14: #{paraphrase_gpt_forward.11} parent=5 // pred_check_branch
      %174 = sbr.rel (%p172) target = $region16
    $region15: #{paraphrase_gpt_forward.11} parent=5 // pred_region
      // Predicated region
      $region17: #{paraphrase_gpt_forward.11} parent=15 // pred_check
        %p175 = pneg %p44
      $region18: #{paraphrase_gpt_forward.11} parent=15 // pred_check_branch
        %177 = sbr.rel (%p175) target = $region20
      $region19: #{paraphrase_gpt_forward.11} parent=15 // pred_region
        %p178 = scmp.lt.s32.totalorder %s17, 1
        %s179 = scalar_select %p178, %s17, 1
        %p180 = scmp.lt.s32.totalorder %s18, 0
        %s181 = scalar_select %p180, %s18, 0
        %s182 = sadd.s32 %s181, %s179
        %s183 = smul.addr %s182, 4
        %s184 = scalar_lea.vmem %s0, %s183
      $region20: #{paraphrase_gpt_forward.11} parent=15 // pred_fallthru
        _
      // Predicated region
      $region21: #{paraphrase_gpt_forward.11} parent=15 // pred_check
        %p185 = pneg %p70
      $region22: #{paraphrase_gpt_forward.11} parent=15 // pred_check_branch
        %187 = sbr.rel (%p185) target = $region24
      $region23: #{paraphrase_gpt_forward.11} parent=15 // pred_region
        %p188 = scmp.lt.s32.totalorder %s17, 1
        %s189 = scalar_select %p188, %s17, 1
        %s190 = smul.addr %s189, 4
        %s191 = scalar_lea.vmem %s1, %s190
      $region24: #{paraphrase_gpt_forward.11} parent=15 // pred_fallthru
        _
      // Predicated region
      $region25: #{paraphrase_gpt_forward.11} parent=15 // pred_check
        %p192 = pneg %p96
      $region26: #{paraphrase_gpt_forward.11} parent=15 // pred_check_branch
        %194 = sbr.rel (%p192) target = $region28
      $region27: #{paraphrase_gpt_forward.11} parent=15 // pred_region
        %p195 = scmp.lt.s32.totalorder %s17, 1
        %s196 = scalar_select %p195, %s17, 1
        %s197 = smul.addr %s196, 4
        %s198 = scalar_lea.vmem %s2, %s197
      $region28: #{paraphrase_gpt_forward.11} parent=15 // pred_fallthru
        _
      // Predicated region
      $region29: #{paraphrase_gpt_forward.11} parent=15 // pred_check
        %p199 = pneg %p122
      $region30: #{paraphrase_gpt_forward.11} parent=15 // pred_check_branch
        %201 = sbr.rel (%p199) target = $region32
      $region31: #{paraphrase_gpt_forward.11} parent=15 // pred_region
        %p202 = scmp.lt.s32.totalorder %s17, 1
        %s203 = scalar_select %p202, %s17, 1
        %s204 = scalar_lea.vmem %s3, %s203
      $region32: #{paraphrase_gpt_forward.11} parent=15 // pred_fallthru
        _
    $region16: #{paraphrase_gpt_forward.11} parent=5 // pred_fallthru
      _
    %p205 = scmp.le.s32.totalorder 1, %s10
    %p206 = scmp.lt.s32.totalorder %s10, 3
    %p207 = pnand %p205, %p206
    %p208 = pneg %p207
    // Predicated region
    $region33: #{paraphrase_gpt_forward.11} parent=5 // pred_check
      _
    $region34: #{paraphrase_gpt_forward.11} parent=5 // pred_check_branch
      %210 = sbr.rel (%p207) target = $region36
    $region35: #{paraphrase_gpt_forward.11} parent=5 // pred_region
      %s211 = ssub.s32 %s10, 1
      %p212 = scmp.lt.s32.totalorder %s19, 1
      %s213 = scalar_select %p212, %s19, 1
      %p214 = scmp.lt.s32.totalorder %s20, 0
      %s215 = scalar_select %p214, %s20, 0
      %s216 = sadd.s32 %s215, %s213
      %s217 = smul.addr %s216, 4
      %s218 = scalar_lea.vmem %s0, %s217
      %p219 = pneg %p50
      %p220 = pneg %p47
      %p221 = scmp.lt.s32.totalorder %s19, 1
      %s222 = scalar_select %p221, %s19, 1
      %s223 = smul.addr %s222, 4
      %s224 = scalar_lea.vmem %s1, %s223
      %p225 = pneg %p76
      %p226 = pneg %p73
      %p227 = scmp.lt.s32.totalorder %s19, 1
      %s228 = scalar_select %p227, %s19, 1
      %s229 = smul.addr %s228, 4
      %s230 = scalar_lea.vmem %s2, %s229
      %p231 = pneg %p102
      %p232 = pneg %p99
      %p233 = scmp.lt.s32.totalorder %s19, 1
      %s234 = scalar_select %p233, %s19, 1
      %s235 = scalar_lea.vmem %s3, %s234
      %p236 = pneg %p128
      %p237 = pneg %p125
      %p238 = pneg %p156
      %p239 = pneg %p153
      %p240 = scmp.lt.s32.totalorder %s19, 1
      %s241 = scalar_select %p240, %s19, 1
      %p242 = scmp.lt.s32.totalorder %s20, 0
      %s243 = scalar_select %p242, %s20, 0
      %s244 = sadd.s32 %s243, %s241
      %s245 = smul.addr %s244, 4
      %s246 = scalar_lea.vmem %s4, %s245
      %p247 = scmp.lt.s32.totalorder %s19, 1
      %s248 = scalar_select %p247, %s19, 1
      %p249 = scmp.lt.s32.totalorder %s20, 0
      %s250 = scalar_select %p249, %s20, 0
      %s251 = sadd.s32 %s250, %s248
      %s252 = smul.addr %s251, 4
      %s253 = scalar_lea.vmem %s0, %s252
      %p254 = scmp.lt.s32.totalorder %s19, 1
      %s255 = scalar_select %p254, %s19, 1
      %s256 = smul.addr %s255, 4
      %s257 = scalar_lea.vmem %s1, %s256
      %p258 = scmp.lt.s32.totalorder %s19, 1
      %s259 = scalar_select %p258, %s19, 1
      %s260 = smul.addr %s259, 4
      %s261 = scalar_lea.vmem %s2, %s260
      %p262 = scmp.lt.s32.totalorder %s19, 1
      %s263 = scalar_select %p262, %s19, 1
      %s264 = scalar_lea.vmem %s3, %s263
      %p265 = scmp.lt.s32.totalorder %s19, 1
      %s266 = scalar_select %p265, %s19, 1
      %p267 = scmp.lt.s32.totalorder %s20, 0
      %s268 = scalar_select %p267, %s20, 0
      %s269 = sadd.s32 %s268, %s266
      %s270 = smul.addr %s269, 4
      %s271 = scalar_lea.vmem %s4, %s270
      %s274 = smul.u32 %s20, 8
      %v275 = vlaneseq
      %v276 = vshrl.u32 %v275, 7
      %v277 = vstv %s274
      %v278 = vadd.s32 %v277, %v276
      %v279 = vlaneseq
      %v280 = vand.u32 %v279, 127
      %vm281 = vcmp.le.s32.totalorder %v280, %v278
      %v282 = vld [vmem:[%s264] sm:$0x1]
      %vm283 = vcmp.gt.s32.totalorder %v282, 0
      %v284 = vsel %vm283, 1, 0
      %v285 = vlaneseq
      %v286 = vshrl.u32 %v285, 7
      %v287 = vsub.s32 0, %v286
      %v288 = vrot.slane %v284, %v287
      %vm289 = vcmp.eq.s32.totalorder %v288, 1
      %vm290 = vmand %vm281, %vm289
      %v291 = vsel %vm290, 0.0, -1e+09
      %v292 = vld [vmem:[%s253] sm:$0xf]
      %v293 = vmul.bf16 %v292, 1048592000
      %v294 = vld [vmem:[%s257] sm:$0xf]
      %v295 = vld [vmem:[%s261] sm:$0xf]
      %vm296 = vcmask 130048
      %v298 = vsel %vm296, %v293, 0
      %v301 = vsel %vm296, %v294, 0
      %303 = vmatprep.subr.bf16.mxu0 0
      %304 = vmatpush1.bf16.xpose.msra.mxu0 0
      %305 = vmatprep.subr.bf16.mxu0 0
      %306 = vmatpush1.bf16.xpose.msra.mxu0 0
      %307 = vmatprep.subr.bf16.mxu0 0
      %308 = vmatpush1.bf16.xpose.msra.mxu0 0
      %309 = vmatprep.subr.bf16.mxu0 0
      %310 = vmatpush1.bf16.xpose.msra.mxu0 0
      %311 = vmatprep.subr.bf16.mxu0 0
      %312 = vmatpush1.bf16.xpose.msra.mxu0 0
      %313 = vmatprep.subr.bf16.mxu0 0
      %314 = vmatpush1.bf16.xpose.msra.mxu0 0
      %315 = vmatprep.subr.bf16.mxu0 0
      %316 = vmatpush1.bf16.xpose.msra.mxu0 0
      %317 = vmatprep.subr.bf16.mxu0 0
      %318 = vmatpush1.bf16.xpose.msra.mxu0 %v301
      %319 = vmatprep.subr.bf16.mxu0 0
      %320 = vmatpush2.bf16.xpose.msra.mxu0 0
      %321 = vmatprep.subr.bf16.mxu0 0
      %322 = vmatpush2.bf16.xpose.msra.mxu0 0
      %323 = vmatprep.subr.bf16.mxu0 0
      %324 = vmatpush2.bf16.xpose.msra.mxu0 0
      %325 = vmatprep.subr.bf16.mxu0 0
      %326 = vmatpush2.bf16.xpose.msra.mxu0 0
      %327 = vmatprep.subr.bf16.mxu0 0
      %328 = vmatpush2.bf16.xpose.msra.mxu0 0
      %329 = vmatprep.subr.bf16.mxu0 0
      %330 = vmatpush2.bf16.xpose.msra.mxu0 0
      %331 = vmatprep.subr.bf16.mxu0 0
      %332 = vmatpush2.bf16.xpose.msra.mxu0 0
      %333 = vmatprep.subr.bf16.mxu0 0
      %334 = vmatpush2.bf16.xpose.msra.mxu0 0
      %335 = vmatprep.mubr.bf16.mxu0 0
      %336 = vmatmul.mubr.bf16.gmra.mxu0 %v298
      %v337 = vpop.f32.mrf.mxu0
      %v338 = vadd.f32 %v291, %v337
      %v339 = vpop.f32.mrf.mxu0
      %v340 = vpop.f32.mrf.mxu0
      %v341 = vpop.f32.mrf.mxu0
      %342 = vdwg.mxu0
      %vm343 = vcmask 64512
      %v344 = vsel %vm343, %v338, -inf
      %345 = vmax.xlane.f32.xlu0 %v344
      %v346 = vpop.xlane.xlu0 %345
      %v347 = vsub.f32 %v338, %v346
      %v348 = vmul.f32 %v347, 1.442695
      %v349 = vpow.pop %v348
      %v350 = vsel %vm343, %v349, 0.0
      %351 = vadd.xlane.f32.xlu0 %v350
      %v352 = vpop.xlane.xlu0 %351
      %v353 = vrcp.pop %v352
      %v354 = vmul.f32 %v349, %v353
      %v355 = vpack.c.bf16 %v354, %v354
      %v357 = vsel %vm343, %v355, 0
      %vm359 = vcmask 1043456
      %v361 = vsel %vm359, %v295, 0
      %363 = vmatprep.subr.bf16.mxu0 0
      %364 = vmatpush1.bf16.msra.mxu0 0
      %365 = vmatprep.subr.bf16.mxu0 0
      %366 = vmatpush1.bf16.msra.mxu0 0
      %367 = vmatprep.subr.bf16.mxu0 0
      %368 = vmatpush1.bf16.msra.mxu0 0
      %369 = vmatprep.subr.bf16.mxu0 0
      %370 = vmatpush1.bf16.msra.mxu0 0
      %371 = vmatprep.subr.bf16.mxu0 0
      %372 = vmatpush1.bf16.msra.mxu0 0
      %373 = vmatprep.subr.bf16.mxu0 0
      %374 = vmatpush1.bf16.msra.mxu0 0
      %375 = vmatprep.subr.bf16.mxu0 0
      %376 = vmatpush1.bf16.msra.mxu0 0
      %377 = vmatprep.subr.bf16.mxu0 0
      %378 = vmatpush1.bf16.msra.mxu0 %v361
      %379 = vmatprep.subr.bf16.mxu0 0
      %380 = vmatpush2.bf16.msra.mxu0 0
      %381 = vmatprep.subr.bf16.mxu0 0
      %382 = vmatpush2.bf16.msra.mxu0 0
      %383 = vmatprep.subr.bf16.mxu0 0
      %384 = vmatpush2.bf16.msra.mxu0 0
      %385 = vmatprep.subr.bf16.mxu0 0
      %386 = vmatpush2.bf16.msra.mxu0 0
      %387 = vmatprep.subr.bf16.mxu0 0
      %388 = vmatpush2.bf16.msra.mxu0 0
      %389 = vmatprep.subr.bf16.mxu0 0
      %390 = vmatpush2.bf16.msra.mxu0 0
      %391 = vmatprep.subr.bf16.mxu0 0
      %392 = vmatpush2.bf16.msra.mxu0 0
      %393 = vmatprep.subr.bf16.mxu0 0
      %394 = vmatpush2.bf16.msra.mxu0 0
      %395 = vmatprep.mubr.bf16.mxu0 0
      %396 = vmatmul.mubr.bf16.gmra.mxu0 %v357
      %v397 = vpop.f32.mrf.mxu0
      %v398 = vadd.f32 0.0, %v397
      %v399 = vpop.f32.mrf.mxu0
      %v400 = vpop.f32.mrf.mxu0
      %v401 = vpop.f32.mrf.mxu0
      %402 = vdwg.mxu0
      %403 = vst.msk [vmem:[#allocation2] sm:$0xff] %vm296, %v398
      %v404 = vld [vmem:[%s253] sm:$0xf]
      %v405 = vmul.bf16 %v404, 1048592000
      %v406 = vld [vmem:[%s257] sm:$0xf]
      %v407 = vld [vmem:[%s261] sm:$0xf]
      %v409 = vunpack.c.l.b16 %v405
      %v410 = vpack.c.b16 %v409, %v409
      %411 = vrot.lane.b32.xlu0 %v410, 112
      %v412 = vpop.permute.xlu0 %411
      %v414 = vunpack.c.l.b16 %v406
      %v415 = vpack.c.b16 %v414, %v414
      %416 = vrot.lane.b32.xlu0 %v415, 112
      %v417 = vpop.permute.xlu0 %416
      %v419 = vsel %vm296, %v412, 0
      %v422 = vsel %vm296, %v417, 0
      %424 = vmatprep.subr.bf16.mxu0 0
      %425 = vmatpush1.bf16.xpose.msra.mxu0 0
      %426 = vmatprep.subr.bf16.mxu0 0
      %427 = vmatpush1.bf16.xpose.msra.mxu0 0
      %428 = vmatprep.subr.bf16.mxu0 0
      %429 = vmatpush1.bf16.xpose.msra.mxu0 0
      %430 = vmatprep.subr.bf16.mxu0 0
      %431 = vmatpush1.bf16.xpose.msra.mxu0 0
      %432 = vmatprep.subr.bf16.mxu0 0
      %433 = vmatpush1.bf16.xpose.msra.mxu0 0
      %434 = vmatprep.subr.bf16.mxu0 0
      %435 = vmatpush1.bf16.xpose.msra.mxu0 0
      %436 = vmatprep.subr.bf16.mxu0 0
      %437 = vmatpush1.bf16.xpose.msra.mxu0 0
      %438 = vmatprep.subr.bf16.mxu0 0
      %439 = vmatpush1.bf16.xpose.msra.mxu0 %v422
      %440 = vmatprep.subr.bf16.mxu0 0
      %441 = vmatpush2.bf16.xpose.msra.mxu0 0
      %442 = vmatprep.subr.bf16.mxu0 0
      %443 = vmatpush2.bf16.xpose.msra.mxu0 0
      %444 = vmatprep.subr.bf16.mxu0 0
      %445 = vmatpush2.bf16.xpose.msra.mxu0 0
      %446 = vmatprep.subr.bf16.mxu0 0
      %447 = vmatpush2.bf16.xpose.msra.mxu0 0
      %448 = vmatprep.subr.bf16.mxu0 0
      %449 = vmatpush2.bf16.xpose.msra.mxu0 0
      %450 = vmatprep.subr.bf16.mxu0 0
      %451 = vmatpush2.bf16.xpose.msra.mxu0 0
      %452 = vmatprep.subr.bf16.mxu0 0
      %453 = vmatpush2.bf16.xpose.msra.mxu0 0
      %454 = vmatprep.subr.bf16.mxu0 0
      %455 = vmatpush2.bf16.xpose.msra.mxu0 0
      %456 = vmatprep.mubr.bf16.mxu0 0
      %457 = vmatmul.mubr.bf16.gmra.mxu0 %v419
      %v458 = vpop.f32.mrf.mxu0
      %v459 = vadd.f32 %v291, %v458
      %v460 = vpop.f32.mrf.mxu0
      %v461 = vpop.f32.mrf.mxu0
      %v462 = vpop.f32.mrf.mxu0
      %463 = vdwg.mxu0
      %v464 = vsel %vm343, %v459, -inf
      %465 = vmax.xlane.f32.xlu0 %v464
      %v466 = vpop.xlane.xlu0 %465
      %v467 = vsub.f32 %v459, %v466
      %v468 = vmul.f32 %v467, 1.442695
      %v469 = vpow.pop %v468
      %v470 = vsel %vm343, %v469, 0.0
      %471 = vadd.xlane.f32.xlu0 %v470
      %v472 = vpop.xlane.xlu0 %471
      %v473 = vrcp.pop %v472
      %v474 = vmul.f32 %v469, %v473
      %v475 = vpack.c.bf16 %v474, %v474
      %v477 = vunpack.c.l.b16 %v407
      %v478 = vpack.c.b16 %v477, %v477
      %479 = vrot.lane.b32.xlu0 %v478, 112
      %v480 = vpop.permute.xlu0 %479
      %v482 = vsel %vm343, %v475, 0
      %v485 = vsel %vm359, %v480, 0
      %487 = vmatprep.subr.bf16.mxu0 0
      %488 = vmatpush1.bf16.msra.mxu0 0
      %489 = vmatprep.subr.bf16.mxu0 0
      %490 = vmatpush1.bf16.msra.mxu0 0
      %491 = vmatprep.subr.bf16.mxu0 0
      %492 = vmatpush1.bf16.msra.mxu0 0
      %493 = vmatprep.subr.bf16.mxu0 0
      %494 = vmatpush1.bf16.msra.mxu0 0
      %495 = vmatprep.subr.bf16.mxu0 0
      %496 = vmatpush1.bf16.msra.mxu0 0
      %497 = vmatprep.subr.bf16.mxu0 0
      %498 = vmatpush1.bf16.msra.mxu0 0
      %499 = vmatprep.subr.bf16.mxu0 0
      %500 = vmatpush1.bf16.msra.mxu0 0
      %501 = vmatprep.subr.bf16.mxu0 0
      %502 = vmatpush1.bf16.msra.mxu0 %v485
      %503 = vmatprep.subr.bf16.mxu0 0
      %504 = vmatpush2.bf16.msra.mxu0 0
      %505 = vmatprep.subr.bf16.mxu0 0
      %506 = vmatpush2.bf16.msra.mxu0 0
      %507 = vmatprep.subr.bf16.mxu0 0
      %508 = vmatpush2.bf16.msra.mxu0 0
      %509 = vmatprep.subr.bf16.mxu0 0
      %510 = vmatpush2.bf16.msra.mxu0 0
      %511 = vmatprep.subr.bf16.mxu0 0
      %512 = vmatpush2.bf16.msra.mxu0 0
      %513 = vmatprep.subr.bf16.mxu0 0
      %514 = vmatpush2.bf16.msra.mxu0 0
      %515 = vmatprep.subr.bf16.mxu0 0
      %516 = vmatpush2.bf16.msra.mxu0 0
      %517 = vmatprep.subr.bf16.mxu0 0
      %518 = vmatpush2.bf16.msra.mxu0 0
      %519 = vmatprep.mubr.bf16.mxu0 0
      %520 = vmatmul.mubr.bf16.gmra.mxu0 %v482
      %v521 = vpop.f32.mrf.mxu0
      %v522 = vadd.f32 0.0, %v521
      %v523 = vpop.f32.mrf.mxu0
      %v524 = vpop.f32.mrf.mxu0
      %v525 = vpop.f32.mrf.mxu0
      %526 = vdwg.mxu0
      %528 = vrot.lane.b32.xlu0 %v522, 16
      %v529 = vpop.permute.xlu0 %528
      %vm531 = vcmask 261248
      %532 = vst.msk [vmem:[#allocation2] sm:$0xff] %vm531, %v529
      %v533 = vld [vmem:[#allocation2] sm:$0xff]
      %v534 = vpack.c.bf16 %v533, %v533
      %vm535 = vcmask 257024
      %536 = vst.msk [vmem:[%s271] sm:$0xf] %vm535, %v534
      %p537 = scmp.lt.s32.totalorder %s19, 1
      %s538 = scalar_select %p537, %s19, 1
      %p539 = scmp.lt.s32.totalorder %s20, 0
      %s540 = scalar_select %p539, %s20, 0
      %s541 = sadd.s32 %s540, %s538
      %s542 = smul.addr %s541, 4
      %s543 = scalar_lea.vmem %s4, %s542
      // Predicated region
      $region37: #{paraphrase_gpt_forward.11} parent=35 // pred_check
        %p544 = pneg %p153
      $region38: #{paraphrase_gpt_forward.11} parent=35 // pred_check_branch
        %546 = sbr.rel (%p544) target = $region40
      $region39: #{paraphrase_gpt_forward.11} parent=35 // pred_region
        _
      $region40: #{paraphrase_gpt_forward.11} parent=35 // pred_fallthru
        _
    $region36: #{paraphrase_gpt_forward.11} parent=5 // pred_fallthru
      _
    %p547 = scmp.le.s32.totalorder 2, %s10
    // Predicated region
    $region41: #{paraphrase_gpt_forward.11} parent=5 // pred_check
      %p548 = pneg %p547
    $region42: #{paraphrase_gpt_forward.11} parent=5 // pred_check_branch
      %550 = sbr.rel (%p548) target = $region44
    $region43: #{paraphrase_gpt_forward.11} parent=5 // pred_region
      %s551 = ssub.s32 %s10, 2
      // Predicated region
      $region45: #{paraphrase_gpt_forward.11} parent=43 // pred_check
        %p552 = pneg %p159
      $region46: #{paraphrase_gpt_forward.11} parent=43 // pred_check_branch
        %554 = sbr.rel (%p552) target = $region48
      $region47: #{paraphrase_gpt_forward.11} parent=43 // pred_region
        %p555 = scmp.lt.s32.totalorder %s21, 1
        %s556 = scalar_select %p555, %s21, 1
        %p557 = scmp.lt.s32.totalorder %s22, 0
        %s558 = scalar_select %p557, %s22, 0
        %s559 = sadd.s32 %s558, %s556
        %s560 = smul.addr %s559, 4
        %s561 = scalar_lea.vmem %s4, %s560
      $region48: #{paraphrase_gpt_forward.11} parent=43 // pred_fallthru
        _
    $region44: #{paraphrase_gpt_forward.11} parent=5 // pred_fallthru
      _
  $region6: #{paraphrase_gpt_forward.11} parent=0 // loop_footer
    %s14 = sadd.s32 1, %s10
  $region7: #{paraphrase_gpt_forward.11} parent=0 // loop_footer_branch
    %9 = sbr.rel target = $region3
  $region8: #{paraphrase_gpt_forward.11} parent=0 // loop_exit
    _

// kernel: paraphrase_gpt_forward.14
$region0: #{paraphrase_gpt_forward.14}
  #allocation0 [shape = 'u32[]', space=smem, size = 0x4, offset = 0x4, fixed_abs, tag = 'smem constant byte address 0x4 - core index']
  #allocation1 [shape = 'u32[144,128]{1,0:T(1,128)}', space=vmem, size = 0x12000, scoped, tag = 'internal scratch']
  #allocation2 [shape = 'f32[16,32]{1,0:T(8,128)}', space=vmem, size = 0x2000, scoped, tag = 'scratch operand']
  %s0 = inlined_call_operand.vmem [shape: bf16[16,128], index: 0, kind: input, shape index: {}]
  %s1 = inlined_call_operand.vmem [shape: bf16[128,32], index: 1, kind: input, shape index: {}]
  %s2 = inlined_call_operand.vmem [shape: f32[1,32], index: 2, kind: input, shape index: {}]
  %s3 = inlined_call_operand.vmem [shape: bf16[16,32], index: 3, kind: input, shape index: {}]
  %s4 = inlined_call_operand.vmem [shape: bf16[16,32], index: 4, kind: output, shape index: {}]
  %s5 = sld [smem:[#allocation0]]
  $region34: #{paraphrase_gpt_forward.14} parent=0
    _
  %s7 = ssub.s32 1, %s5
  %s8 = scalar_select 0, %s7, %s5
  // Predicated region
  $region2: #{paraphrase_gpt_forward.14} parent=0 // pred_check
    _
  $region3: #{paraphrase_gpt_forward.14} parent=0 // pred_check_branch
    %10 = sbr.rel (0) target = $region5
  $region4: #{paraphrase_gpt_forward.14} parent=0 // pred_region
    _
  $region5: #{paraphrase_gpt_forward.14} parent=0 // pred_fallthru
    _
  // Predicated region
  $region6: #{paraphrase_gpt_forward.14} parent=0 // pred_check
    _
  $region7: #{paraphrase_gpt_forward.14} parent=0 // pred_check_branch
    %12 = sbr.rel (0) target = $region9
  $region8: #{paraphrase_gpt_forward.14} parent=0 // pred_region
    _
  $region9: #{paraphrase_gpt_forward.14} parent=0 // pred_fallthru
    _
  // Predicated region
  $region10: #{paraphrase_gpt_forward.14} parent=0 // pred_check
    _
  $region11: #{paraphrase_gpt_forward.14} parent=0 // pred_check_branch
    %14 = sbr.rel (0) target = $region13
  $region12: #{paraphrase_gpt_forward.14} parent=0 // pred_region
    _
  $region13: #{paraphrase_gpt_forward.14} parent=0 // pred_fallthru
    _
  // Predicated region
  $region14: #{paraphrase_gpt_forward.14} parent=0 // pred_check
    _
  $region15: #{paraphrase_gpt_forward.14} parent=0 // pred_check_branch
    %16 = sbr.rel (0) target = $region17
  $region16: #{paraphrase_gpt_forward.14} parent=0 // pred_region
    _
  $region17: #{paraphrase_gpt_forward.14} parent=0 // pred_fallthru
    _
  %p18 = scmp.eq.s32.totalorder 0, 0
  // Predicated region
  $region18: #{paraphrase_gpt_forward.14} parent=0 // pred_check
    %p19 = pneg %p18
  $region19: #{paraphrase_gpt_forward.14} parent=0 // pred_check_branch
    %21 = sbr.rel (%p19) target = $region21
  $region20: #{paraphrase_gpt_forward.14} parent=0 // pred_region
    %vm22 = vcmask 261120
    %23 = vst.msk [vmem:[#allocation2] sm:$0xff] %vm22, 0.0
    %24 = vst.msk [vmem:[#allocation2 + $0x8] sm:$0xff] %vm22, 0.0
  $region21: #{paraphrase_gpt_forward.14} parent=0 // pred_fallthru
    _
  %v25 = vld [vmem:[#allocation2] sm:$0xff]
  %v26 = vld [vmem:[#allocation2 + $0x8] sm:$0xff]
  %v27 = vld [vmem:[%s0] sm:$0xf]
  %v28 = vld [vmem:[%s0 + $0x4] sm:$0xf]
  %v29 = vld [vmem:[%s1] sm:$0xf]
  %v30 = vld [vmem:[%s1 + $0x4] sm:$0xf]
  %v31 = vld [vmem:[%s1 + $0x8] sm:$0xf]
  %v32 = vld [vmem:[%s1 + $0xc] sm:$0xf]
  %v33 = vld [vmem:[%s1 + $0x10] sm:$0xf]
  %v34 = vld [vmem:[%s1 + $0x14] sm:$0xf]
  %v35 = vld [vmem:[%s1 + $0x18] sm:$0xf]
  %v36 = vld [vmem:[%s1 + $0x1c] sm:$0xf]
  %v37 = vld [vmem:[%s1 + $0x20] sm:$0xf]
  %v38 = vld [vmem:[%s1 + $0x24] sm:$0xf]
  %v39 = vld [vmem:[%s1 + $0x28] sm:$0xf]
  %v40 = vld [vmem:[%s1 + $0x2c] sm:$0xf]
  %v41 = vld [vmem:[%s1 + $0x30] sm:$0xf]
  %v42 = vld [vmem:[%s1 + $0x34] sm:$0xf]
  %v43 = vld [vmem:[%s1 + $0x38] sm:$0xf]
  %v44 = vld [vmem:[%s1 + $0x3c] sm:$0xf]
  %v47 = vunpack.c.l.b16 %v27
  %v48 = vunpack.c.l.b16 %v28
  %v49 = vpack.c.b16 %v48, %v47
  %v67 = vunpack.c.l.b16 %v29
  %v68 = vunpack.c.l.b16 %v30
  %v69 = vunpack.c.l.b16 %v31
  %v70 = vunpack.c.l.b16 %v32
  %v71 = vunpack.c.l.b16 %v33
  %v72 = vunpack.c.l.b16 %v34
  %v73 = vunpack.c.l.b16 %v35
  %v74 = vunpack.c.l.b16 %v36
  %v75 = vunpack.c.l.b16 %v37
  %v76 = vunpack.c.l.b16 %v38
  %v77 = vunpack.c.l.b16 %v39
  %v78 = vunpack.c.l.b16 %v40
  %v79 = vunpack.c.l.b16 %v41
  %v80 = vunpack.c.l.b16 %v42
  %v81 = vunpack.c.l.b16 %v43
  %v82 = vunpack.c.l.b16 %v44
  %v83 = vpack.c.b16 %v68, %v67
  %v84 = vpack.c.b16 %v70, %v69
  %v85 = vpack.c.b16 %v72, %v71
  %v86 = vpack.c.b16 %v74, %v73
  %v87 = vpack.c.b16 %v76, %v75
  %v88 = vpack.c.b16 %v78, %v77
  %v89 = vpack.c.b16 %v80, %v79
  %v90 = vpack.c.b16 %v82, %v81
  %99 = vmatprep.subr.bf16.mxu0 0
  %100 = vmatpush1.bf16.msra.mxu0 %v90
  %101 = vmatprep.subr.bf16.mxu0 0
  %102 = vmatpush1.bf16.msra.mxu0 %v89
  %103 = vmatprep.subr.bf16.mxu0 0
  %104 = vmatpush1.bf16.msra.mxu0 %v88
  %105 = vmatprep.subr.bf16.mxu0 0
  %106 = vmatpush1.bf16.msra.mxu0 %v87
  %107 = vmatprep.subr.bf16.mxu0 0
  %108 = vmatpush1.bf16.msra.mxu0 %v86
  %109 = vmatprep.subr.bf16.mxu0 0
  %110 = vmatpush1.bf16.msra.mxu0 %v85
  %111 = vmatprep.subr.bf16.mxu0 0
  %112 = vmatpush1.bf16.msra.mxu0 %v84
  %113 = vmatprep.subr.bf16.mxu0 0
  %114 = vmatpush1.bf16.msra.mxu0 %v83
  %115 = vmatprep.subr.bf16.mxu0 0
  %116 = vmatpush2.bf16.msra.mxu0 0
  %117 = vmatprep.subr.bf16.mxu0 0
  %118 = vmatpush2.bf16.msra.mxu0 0
  %119 = vmatprep.subr.bf16.mxu0 0
  %120 = vmatpush2.bf16.msra.mxu0 0
  %121 = vmatprep.subr.bf16.mxu0 0
  %122 = vmatpush2.bf16.msra.mxu0 0
  %123 = vmatprep.subr.bf16.mxu0 0
  %124 = vmatpush2.bf16.msra.mxu0 0
  %125 = vmatprep.subr.bf16.mxu0 0
  %126 = vmatpush2.bf16.msra.mxu0 0
  %127 = vmatprep.subr.bf16.mxu0 0
  %128 = vmatpush2.bf16.msra.mxu0 0
  %129 = vmatprep.subr.bf16.mxu0 0
  %130 = vmatpush2.bf16.msra.mxu0 0
  %131 = vmatprep.mubr.bf16.mxu0 0
  %132 = vmatmul.mubr.bf16.gmra.mxu0 %v49
  %v133 = vpop.f32.mrf.mxu0
  %v134 = vadd.f32 0.0, %v133
  %v135 = vpop.f32.mrf.mxu0
  %v136 = vpop.f32.mrf.mxu0
  %v137 = vadd.f32 0.0, %v136
  %v138 = vpop.f32.mrf.mxu0
  %139 = vdwg.mxu0
  %v140 = vadd.f32 %v25, %v134
  %v141 = vadd.f32 %v26, %v137
  %vm142 = vcmask 261120
  %143 = vst.msk [vmem:[#allocation2] sm:$0xff] %vm142, %v140
  %144 = vst.msk [vmem:[#allocation2 + $0x8] sm:$0xff] %vm142, %v141
  // Predicated region
  $region22: #{paraphrase_gpt_forward.14} parent=0 // pred_check
    %p145 = pneg %p18
  $region23: #{paraphrase_gpt_forward.14} parent=0 // pred_check_branch
    %147 = sbr.rel (%p145) target = $region25
  $region24: #{paraphrase_gpt_forward.14} parent=0 // pred_region
    %v148 = vld [vmem:[#allocation2] sm:$0xff]
    %v149 = vld [vmem:[#allocation2 + $0x8] sm:$0xff]
    %v150 = vld [vmem:[%s2] sm:$0x1]
    %v152 = vlaneseq
    %v153 = vshrl.u32 %v152, 7
    %v154 = vsub.s32 0, %v153
    %v155 = vrot.slane %v150, %v154
    %v157 = vadd.f32 %v148, %v155
    %v158 = vadd.f32 %v149, %v155
    %v159 = vld [vmem:[%s3] sm:$0xf]
    %v160 = vld [vmem:[%s3 + $0x4] sm:$0xf]
    %v161 = vunpack.c.l.bf16 %v159
    %v162 = vunpack.c.l.bf16 %v160
    %v163 = vadd.f32 %v157, %v161
    %v164 = vadd.f32 %v158, %v162
    %v165 = vpack.c.bf16 %v164, %v163
    %v167 = vunpack.c.l.b16 %v165
    %v168 = vunpack.c.h.b16 %v165
    %v169 = vpack.c.b16 %v167, %v167
    %v170 = vpack.c.b16 %v168, %v168
    %vm173 = vcmask 257024
    %174 = vst.msk [vmem:[%s4] sm:$0xf] %vm173, %v169
    %175 = vst.msk [vmem:[%s4 + $0x4] sm:$0xf] %vm173, %v170
  $region25: #{paraphrase_gpt_forward.14} parent=0 // pred_fallthru
    _
  // Predicated region
  $region26: #{paraphrase_gpt_forward.14} parent=0 // pred_check
    _
  $region27: #{paraphrase_gpt_forward.14} parent=0 // pred_check_branch
    %177 = sbr.rel (0) target = $region29
  $region28: #{paraphrase_gpt_forward.14} parent=0 // pred_region
    _
  $region29: #{paraphrase_gpt_forward.14} parent=0 // pred_fallthru
    _
  // Predicated region
  $region30: #{paraphrase_gpt_forward.14} parent=0 // pred_check
    _
  $region31: #{paraphrase_gpt_forward.14} parent=0 // pred_check_branch
    %179 = sbr.rel (0) target = $region33
  $region32: #{paraphrase_gpt_forward.14} parent=0 // pred_region
    _
  $region33: #{paraphrase_gpt_forward.14} parent=0 // pred_fallthru
    _

</llo_original>
